<compile_context>
chip_gen: v7x
topology: tpu7x:2x2x1
jax: 0.10.0
libtpu: 0.0.40
codegen_flags: <defaults>
</compile_context>

<pallas_src>
import jax
import jax.numpy as jnp
from jax.experimental import pallas as pl
from jax.experimental.pallas import tpu as pltpu


def _lane_pad(c):
    return ((c + 127) // 128) * 128


def _make_lateral_kernel(tile_h, halo_rows, W, Cin, Cout, has_skip, mxu_dtype):
    """Fused LateralBlock kernel for one (batch, H-tile) grid step."""
    WCin, WCout = W * Cin, W * Cout
    f32 = jnp.float32

    def band_conv(src_ref, row0, rows, wband_ref):
        # 3x3 conv over `rows` output rows as 3 accumulating MXU matmuls.
        # src_ref rows [row0+dy, row0+dy+rows) are the dy = -1/0/+1 row taps;
        # the dx taps and the left/right SAME zero padding live inside the
        # block-tridiagonal band matrices wband_ref[dy] of shape (W*Ci, W*Co).
        acc = jnp.dot(src_ref[row0:row0 + rows, :].astype(mxu_dtype),
                      wband_ref[0], preferred_element_type=f32)
        for dy in (1, 2):
            acc = acc + jnp.dot(
                src_ref[row0 + dy:row0 + dy + rows, :].astype(mxu_dtype),
                wband_ref[dy], preferred_element_type=f32)
        return acc

    def kernel(*refs):
        if has_skip:
            (alpha_ref, xc_ref, xu_ref, xd_ref, w1_ref, b1_ref, w2_ref, b2_ref,
             ws_ref, bs_ref, out_ref, xwin_ref, hwin_ref) = refs
        else:
            (alpha_ref, xc_ref, xu_ref, xd_ref, w1_ref, b1_ref, w2_ref, b2_ref,
             out_ref, xwin_ref, hwin_ref) = refs

        i = pl.program_id(1)
        n_tiles = pl.num_programs(1)
        a1 = alpha_ref[0]
        a2 = alpha_ref[1]

        # ---- raw-x row window: image rows i*tile_h-2 .. i*tile_h+tile_h+1 -----
        xwin_ref[2:tile_h + 2, :] = xc_ref[0]

        @pl.when(i > 0)
        def _():
            xwin_ref[0:2, :] = xu_ref[0, halo_rows - 2:halo_rows, :]

        @pl.when(i == 0)
        def _():   # image rows -2/-1: conv "SAME" zero padding
            xwin_ref[0:2, :] = jnp.zeros((2, WCin), f32)

        @pl.when(i < n_tiles - 1)
        def _():
            xwin_ref[tile_h + 2:tile_h + 4, :] = xd_ref[0, 0:2, :]

        @pl.when(i == n_tiles - 1)
        def _():   # image rows H/H+1: zero padding
            xwin_ref[tile_h + 2:tile_h + 4, :] = jnp.zeros((2, WCin), f32)

        # ---- skip path (raw x, NO PReLU) -- must run before the in-place PReLU
        if has_skip:
            skip = band_conv(xwin_ref, 1, tile_h, ws_ref) + bs_ref[...]
        else:
            skip = xc_ref[0]                    # Cin == Cout: identity residual

        # ---- PReLU1 (f32, in place; prelu(0)==0 keeps the padding valid) ------
        xv = xwin_ref[...]
        xwin_ref[...] = jnp.maximum(xv, 0.0) + a1 * jnp.minimum(xv, 0.0)

        # ---- conv1 over tile_h+2 rows (h rows i*tile_h-1 .. i*tile_h+tile_h) --
        h = band_conv(xwin_ref, 0, tile_h + 2, w1_ref) + b1_ref[...]

        # ---- PReLU2 into the h-row window scratch ------------------------------
        hwin_ref[...] = jnp.maximum(h, 0.0) + a2 * jnp.minimum(h, 0.0)

        @pl.when(i == 0)
        def _():   # h row "-1" is conv2's zero padding (bias would leak otherwise)
            hwin_ref[0:1, :] = jnp.zeros((1, WCout), f32)

        @pl.when(i == n_tiles - 1)
        def _():   # h row "H"
            hwin_ref[tile_h + 1:tile_h + 2, :] = jnp.zeros((1, WCout), f32)

        # ---- conv2 + bias + residual: single lane-dense store -----------------
        fx = band_conv(hwin_ref, 0, tile_h, w2_ref) + b2_ref[...]
        out_ref[0] = (fx + skip).astype(out_ref.dtype)

    return kernel


def _band_weights(w_hwio, W, mxu_dtype):
    """Fold a 3x3 HWIO conv weight into 3 block-tridiagonal (W*Cin, W*Cout)
    matrices (one per dy).  The dx taps and the left/right SAME zero padding
    become the band structure, so each conv is 3 plain matmuls in-kernel."""
    w = w_hwio.astype(jnp.float32)
    mats = []
    for dy in range(3):
        m = 0.0
        for dx in range(3):
            # input column x' = x + dx - 1  ->  eye(W, k=1-dx)[x', x] == 1
            m = m + jnp.kron(jnp.eye(W, k=1 - dx, dtype=jnp.float32), w[dy, dx])
        mats.append(m)
    return jnp.stack(mats).astype(mxu_dtype)          # (3, W*Cin, W*Cout)


def _pick_tile_h(H, W, Cin, Cout, N, budget_bytes=6 << 20):
    """Largest legal tile_h whose per-step VMEM footprint fits the budget."""
    WCi, WCo = _lane_pad(W * Cin), _lane_pad(W * Cout)

    def est(t):
        halo = 8 if t % 8 == 0 else H
        # double-buffered x / out / halo blocks (f32) + the two row-window scratches
        return (8 * (t * WCi + t * WCo + 2 * halo * WCi)
                + 4 * ((t + 4) * WCi + (t + 2) * WCo))

    cands = sorted({t for t in range(8, H + 1, 8) if H % t == 0} | {H})
    fits = [t for t in cands if est(t) <= budget_bytes]
    if not fits:
        return min(cands)
    if N == 1:                       # keep >= 2 grid steps for megacore (v7x)
        multi = [t for t in fits if H // t >= 2]
        if multi:
            return max(multi)
    return max(fits)


def lateral_block_forward(x_nhwc, params, *, tile_h=None, mxu_dtype=jnp.bfloat16):
    """LateralBlock.forward.  x_nhwc: (N, H, W, Cin) f32; HWIO conv weights.

    Lane-packed layout (each image row = one (W*C)-wide lane vector), intended
    for the small-channel regime.  MXU operands in `mxu_dtype` (bf16 default,
    f32 accumulation); all elementwise/PReLU math stays f32."""
    N, H, W, Cin = x_nhwc.shape
    Cout = params["w1"].shape[-1]
    has_skip = params.get("w_skip") is not None
    if not has_skip and Cin != Cout:
        raise ValueError("identity skip requires ch_in == ch_out")
    WCin, WCout = W * Cin, W * Cout
    f32 = jnp.float32

    if (tile_h is None or H % tile_h != 0
            or not (tile_h % 8 == 0 or tile_h == H)):
        tile_h = _pick_tile_h(H, W, Cin, Cout, N)
    halo_rows = 8 if tile_h % 8 == 0 else H          # tile_h | H => H % 8 == 0 too
    n_tiles = H // tile_h
    hb = tile_h // halo_rows                          # halo blocks per tile
    nhb = H // halo_rows                              # halo blocks along H

    x3 = x_nhwc.astype(f32).reshape(N, H, WCin)       # free: NHWC is contiguous
    w1b = _band_weights(params["w1"], W, mxu_dtype)
    w2b = _band_weights(params["w2"], W, mxu_dtype)
    b1r = jnp.tile(params["b1"].astype(f32), W).reshape(1, WCout)
    b2r = jnp.tile(params["b2"].astype(f32), W).reshape(1, WCout)
    alphas = jnp.asarray([params["alpha1"], params["alpha2"]], f32)

    in_specs = [
        pl.BlockSpec(memory_space=pltpu.MemorySpace.SMEM),                 # PReLU alphas
        pl.BlockSpec((1, tile_h, WCin), lambda n, i: (n, i, 0)),           # x center tile
        pl.BlockSpec((1, halo_rows, WCin),                                 # rows above
                     lambda n, i: (n, jnp.maximum(i * hb - 1, 0), 0)),
        pl.BlockSpec((1, halo_rows, WCin),                                 # rows below
                     lambda n, i: (n, jnp.minimum((i + 1) * hb, nhb - 1), 0)),
        pl.BlockSpec((3, WCin, WCout), lambda n, i: (0, 0, 0)),            # conv1 band
        pl.BlockSpec((1, WCout), lambda n, i: (0, 0)),                     # b1 (W-tiled)
        pl.BlockSpec((3, WCout, WCout), lambda n, i: (0, 0, 0)),           # conv2 band
        pl.BlockSpec((1, WCout), lambda n, i: (0, 0)),                     # b2 (W-tiled)
    ]
    args = [alphas, x3, x3, x3, w1b, b1r, w2b, b2r]
    if has_skip:
        wsb = _band_weights(params["w_skip"], W, mxu_dtype)
        bsr = jnp.tile(params["b_skip"].astype(f32), W).reshape(1, WCout)
        in_specs += [pl.BlockSpec((3, WCin, WCout), lambda n, i: (0, 0, 0)),
                     pl.BlockSpec((1, WCout), lambda n, i: (0, 0))]
        args += [wsb, bsr]

    # explicit VMEM budget: double-buffered blocks + band weights + scratches
    wbytes = jnp.dtype(mxu_dtype).itemsize
    est = (8 * (tile_h * _lane_pad(WCin) + tile_h * _lane_pad(WCout)
                + 2 * halo_rows * _lane_pad(WCin))
           + 2 * wbytes * 3 * _lane_pad(WCout)
             * (WCin + WCout + (WCin if has_skip else 0))
           + 4 * ((tile_h + 4) * _lane_pad(WCin) + (tile_h + 2) * _lane_pad(WCout)))
    vmem_limit = int(min(64 << 20, max(2 * est + (4 << 20), 16 << 20)))

    out3 = pl.pallas_call(
        _make_lateral_kernel(tile_h, halo_rows, W, Cin, Cout, has_skip, mxu_dtype),
        out_shape=jax.ShapeDtypeStruct((N, H, WCout), f32),
        grid=(N, n_tiles),
        in_specs=in_specs,
        out_specs=pl.BlockSpec((1, tile_h, WCout), lambda n, i: (n, i, 0)),
        scratch_shapes=[
            pltpu.VMEM((tile_h + 4, WCin), f32),    # raw / prelu1'd x row window
            pltpu.VMEM((tile_h + 2, WCout), f32),   # prelu2(h) row window
        ],
        compiler_params=pltpu.CompilerParams(
            dimension_semantics=("parallel", "parallel"),
            vmem_limit_bytes=vmem_limit),
    )(*args)
    return out3.reshape(N, H, W, Cout)                # free: contiguous


# ---------------- pure-JAX reference (for correctness check) ----------------
def _ref_prelu(x, a):
    return jnp.maximum(x, 0.0) + a * jnp.minimum(x, 0.0)


def _ref_conv(x, w, b):
    y = jax.lax.conv_general_dilated(
        x, w, window_strides=(1, 1), padding="SAME",
        dimension_numbers=("NHWC", "HWIO", "NHWC"))
    return y + b


def _ref_forward(x, p):
    fx = _ref_conv(_ref_prelu(x, p["alpha1"]), p["w1"], p["b1"])
    fx = _ref_conv(_ref_prelu(fx, p["alpha2"]), p["w2"], p["b2"])
    skip = x if p["w_skip"] is None else _ref_conv(x, p["w_skip"], p["b_skip"])
    return fx + skip


if __name__ == "__main__":
    N, Cin, Cout, H, W = 2, 4, 8, 16, 16
    key = jax.random.PRNGKey(0)
    keys = jax.random.split(key, 7)

    # input in the PyTorch NCHW convention, transposed once to NHWC for the kernel
    x_nchw = jax.random.normal(keys[0], (N, Cin, H, W), jnp.float32)
    x = jnp.transpose(x_nchw, (0, 2, 3, 1))  # NHWC

    def conv_params(k, cin, cout):
        kw, kb = jax.random.split(k)
        bound = 1.0 / (cin * 9) ** 0.5
        w = jax.random.uniform(kw, (3, 3, cin, cout), jnp.float32, -bound, bound)
        b = jax.random.uniform(kb, (cout,), jnp.float32, -bound, bound)
        return w, b

    # --- ch_in != ch_out branch (learned 3x3 skip conv) ---
    w1, b1 = conv_params(keys[1], Cin, Cout)
    w2, b2 = conv_params(keys[2], Cout, Cout)
    w_skip, b_skip = conv_params(keys[3], Cin, Cout)
    params = dict(w1=w1, b1=b1, w2=w2, b2=b2,
                  w_skip=w_skip, b_skip=b_skip,
                  alpha1=0.25, alpha2=0.25)  # nn.PReLU() default init
    ref = _ref_forward(x, params)

    # exact-f32 MXU, tile_h=8 so the H-halo path is exercised (n_tiles=2)
    out = jax.block_until_ready(
        lateral_block_forward(x, params, tile_h=8, mxu_dtype=jnp.float32))
    assert out.shape == (N, H, W, Cout)
    if not jnp.allclose(out, ref, rtol=1e-3, atol=1e-4):
        raise AssertionError("f32 kernel mismatch (skip-conv branch)")

    # default config: bf16 MXU operands (f32 accumulate), VMEM-derived tile_h
    out_bf = jax.block_until_ready(lateral_block_forward(x, params))
    if not jnp.allclose(out_bf, ref, rtol=5e-2, atol=5e-2):
        raise AssertionError("bf16-MXU kernel mismatch (skip-conv branch)")

    # --- ch_in == ch_out branch (identity skip) ---
    w1b, b1b = conv_params(keys[4], Cout, Cout)
    w2b, b2b = conv_params(keys[5], Cout, Cout)
    x2 = jax.random.normal(keys[6], (N, H, W, Cout), jnp.float32)
    params2 = dict(w1=w1b, b1=b1b, w2=w2b, b2=b2b,
                   w_skip=None, b_skip=None,
                   alpha1=0.25, alpha2=0.25)
    ref2 = _ref_forward(x2, params2)

    out2 = jax.block_until_ready(
        lateral_block_forward(x2, params2, tile_h=8, mxu_dtype=jnp.float32))
    if not jnp.allclose(out2, ref2, rtol=1e-3, atol=1e-4):
        raise AssertionError("f32 kernel mismatch (identity-skip branch)")

    out2_bf = jax.block_until_ready(lateral_block_forward(x2, params2))
    if not jnp.allclose(out2_bf, ref2, rtol=5e-2, atol=5e-2):
        raise AssertionError("bf16-MXU kernel mismatch (identity-skip branch)")

    print("KERNEL_OK")
</pallas_src>

<mosaic_0001>
module attributes {stable_mosaic.version = 11 : i64} {
  func.func @kernel(%arg0: i32, %arg1: i32, %arg2: memref<2xf32, #tpu.memory_space<smem>>, %arg3: memref<1x8x64xf32, #tpu.memory_space<vmem>>, %arg4: memref<1x8x64xf32, #tpu.memory_space<vmem>>, %arg5: memref<1x8x64xf32, #tpu.memory_space<vmem>>, %arg6: memref<3x64x128xf32, #tpu.memory_space<vmem>>, %arg7: memref<1x128xf32, #tpu.memory_space<vmem>>, %arg8: memref<3x128x128xf32, #tpu.memory_space<vmem>>, %arg9: memref<1x128xf32, #tpu.memory_space<vmem>>, %arg10: memref<3x64x128xf32, #tpu.memory_space<vmem>>, %arg11: memref<1x128xf32, #tpu.memory_space<vmem>>, %arg12: memref<1x8x128xf32, #tpu.memory_space<vmem>>, %arg13: memref<12x64xf32, #tpu.memory_space<vmem>>, %arg14: memref<10x128xf32, #tpu.memory_space<vmem>>) attributes {dimension_semantics = [#tpu.dimension_semantics<parallel>, #tpu.dimension_semantics<parallel>], iteration_bounds = array<i64: 2, 2>, scalar_prefetch = 0 : i64, scratch_operands = 2 : i64, tpu.core_type = #tpu.core_type<tc>, window_params = [{transform_indices = @transform_0, window_bounds = array<i64: 2>}, {transform_indices = @transform_1, window_bounds = array<i64: 1, 8, 64>}, {transform_indices = @transform_2, window_bounds = array<i64: 1, 8, 64>}, {transform_indices = @transform_3, window_bounds = array<i64: 1, 8, 64>}, {pipeline_mode = #tpu.pipeline_mode<synchronous>, transform_indices = @transform_4, window_bounds = array<i64: 3, 64, 128>}, {pipeline_mode = #tpu.pipeline_mode<synchronous>, transform_indices = @transform_5, window_bounds = array<i64: 1, 128>}, {pipeline_mode = #tpu.pipeline_mode<synchronous>, transform_indices = @transform_6, window_bounds = array<i64: 3, 128, 128>}, {pipeline_mode = #tpu.pipeline_mode<synchronous>, transform_indices = @transform_7, window_bounds = array<i64: 1, 128>}, {pipeline_mode = #tpu.pipeline_mode<synchronous>, transform_indices = @transform_8, window_bounds = array<i64: 3, 64, 128>}, {pipeline_mode = #tpu.pipeline_mode<synchronous>, transform_indices = @transform_9, window_bounds = array<i64: 1, 128>}, {transform_indices = @transform_10, window_bounds = array<i64: 1, 8, 128>}]} {
    %c0 = arith.constant 0 : index
    %0 = memref.load %arg2[%c0] : memref<2xf32, #tpu.memory_space<smem>>
    %c1 = arith.constant 1 : index
    %1 = memref.load %arg2[%c1] : memref<2xf32, #tpu.memory_space<smem>>
    %c0_0 = arith.constant 0 : index
    %c0_1 = arith.constant 0 : index
    %c0_2 = arith.constant 0 : index
    %2 = vector.load %arg3[%c0_0, %c0_1, %c0_2] : memref<1x8x64xf32, #tpu.memory_space<vmem>>, vector<1x8x64xf32>
    %3 = vector.shape_cast %2 : vector<1x8x64xf32> to vector<8x64xf32>
    %c2 = arith.constant 2 : index
    %c0_3 = arith.constant 0 : index
    %4 = vector.load %arg13[%c2, %c0_3] : memref<12x64xf32, #tpu.memory_space<vmem>>, vector<8x64xf32>
    tpu.vector_store %arg13[%c2, %c0_3], %3 {strides = array<i32>} : memref<12x64xf32, #tpu.memory_space<vmem>>, vector<8x64xf32>,
    %c0_i32 = arith.constant 0 : i32
    %5 = arith.cmpi sgt, %arg1, %c0_i32 : i32
    %6 = arith.extui %5 : i1 to i32
    %c0_i32_4 = arith.constant 0 : i32
    %7 = arith.cmpi ne, %6, %c0_i32_4 : i32
    scf.if %7 {
      %c0_85 = arith.constant 0 : index
      %c6 = arith.constant 6 : index
      %c0_86 = arith.constant 0 : index
      %95 = vector.load %arg4[%c0_85, %c6, %c0_86] : memref<1x8x64xf32, #tpu.memory_space<vmem>>, vector<1x2x64xf32>
      %96 = vector.shape_cast %95 : vector<1x2x64xf32> to vector<2x64xf32>
      %c0_87 = arith.constant 0 : index
      %c0_88 = arith.constant 0 : index
      %97 = vector.load %arg13[%c0_87, %c0_88] : memref<12x64xf32, #tpu.memory_space<vmem>>, vector<2x64xf32>
      tpu.vector_store %arg13[%c0_87, %c0_88], %96 {strides = array<i32>} : memref<12x64xf32, #tpu.memory_space<vmem>>, vector<2x64xf32>,
    } else {
    }
    %c0_i32_5 = arith.constant 0 : i32
    %8 = arith.cmpi eq, %arg1, %c0_i32_5 : i32
    %9 = arith.extui %8 : i1 to i32
    %c0_i32_6 = arith.constant 0 : i32
    %10 = arith.cmpi ne, %9, %c0_i32_6 : i32
    scf.if %10 {
      %cst_85 = arith.constant 0.000000e+00 : f32
      %95 = vector.broadcast %cst_85 : f32 to vector<2x64xf32>
      %c0_86 = arith.constant 0 : index
      %c0_87 = arith.constant 0 : index
      %96 = vector.load %arg13[%c0_86, %c0_87] : memref<12x64xf32, #tpu.memory_space<vmem>>, vector<2x64xf32>
      tpu.vector_store %arg13[%c0_86, %c0_87], %95 {strides = array<i32>} : memref<12x64xf32, #tpu.memory_space<vmem>>, vector<2x64xf32>,
    } else {
    }
    %c1_i32 = arith.constant 1 : i32
    %11 = arith.cmpi slt, %arg1, %c1_i32 : i32
    %12 = arith.extui %11 : i1 to i32
    %c0_i32_7 = arith.constant 0 : i32
    %13 = arith.cmpi ne, %12, %c0_i32_7 : i32
    scf.if %13 {
      %c0_85 = arith.constant 0 : index
      %c0_86 = arith.constant 0 : index
      %c0_87 = arith.constant 0 : index
      %95 = vector.load %arg5[%c0_85, %c0_86, %c0_87] : memref<1x8x64xf32, #tpu.memory_space<vmem>>, vector<1x2x64xf32>
      %96 = vector.shape_cast %95 : vector<1x2x64xf32> to vector<2x64xf32>
      %c10 = arith.constant 10 : index
      %c0_88 = arith.constant 0 : index
      %97 = vector.load %arg13[%c10, %c0_88] : memref<12x64xf32, #tpu.memory_space<vmem>>, vector<2x64xf32>
      tpu.vector_store %arg13[%c10, %c0_88], %96 {strides = array<i32>} : memref<12x64xf32, #tpu.memory_space<vmem>>, vector<2x64xf32>,
    } else {
    }
    %c1_i32_8 = arith.constant 1 : i32
    %14 = arith.cmpi eq, %arg1, %c1_i32_8 : i32
    %15 = arith.extui %14 : i1 to i32
    %c0_i32_9 = arith.constant 0 : i32
    %16 = arith.cmpi ne, %15, %c0_i32_9 : i32
    scf.if %16 {
      %cst_85 = arith.constant 0.000000e+00 : f32
      %95 = vector.broadcast %cst_85 : f32 to vector<2x64xf32>
      %c10 = arith.constant 10 : index
      %c0_86 = arith.constant 0 : index
      %96 = vector.load %arg13[%c10, %c0_86] : memref<12x64xf32, #tpu.memory_space<vmem>>, vector<2x64xf32>
      tpu.vector_store %arg13[%c10, %c0_86], %95 {strides = array<i32>} : memref<12x64xf32, #tpu.memory_space<vmem>>, vector<2x64xf32>,
    } else {
    }
    %c1_10 = arith.constant 1 : index
    %c0_11 = arith.constant 0 : index
    %17 = vector.load %arg13[%c1_10, %c0_11] : memref<12x64xf32, #tpu.memory_space<vmem>>, vector<8x64xf32>
    %c0_12 = arith.constant 0 : index
    %c0_13 = arith.constant 0 : index
    %c0_14 = arith.constant 0 : index
    %18 = vector.load %arg10[%c0_12, %c0_13, %c0_14] : memref<3x64x128xf32, #tpu.memory_space<vmem>>, vector<1x64x128xf32>
    %19 = vector.shape_cast %18 : vector<1x64x128xf32> to vector<64x128xf32>
    %cst = arith.constant dense<0.000000e+00> : vector<8x128xf32>
    %20 = tpu.matmul %17, %19, %cst {dimension_numbers = #tpu.dot_dimension_numbers<[1], [0], [0], [1], [0, 0, 1, 1], [], []>} : vector<8x64xf32>, vector<64x128xf32>, vector<8x128xf32> -> vector<8x128xf32>
    %c2_15 = arith.constant 2 : index
    %c0_16 = arith.constant 0 : index
    %21 = vector.load %arg13[%c2_15, %c0_16] : memref<12x64xf32, #tpu.memory_space<vmem>>, vector<8x64xf32>
    %c1_17 = arith.constant 1 : index
    %c0_18 = arith.constant 0 : index
    %c0_19 = arith.constant 0 : index
    %22 = vector.load %arg10[%c1_17, %c0_18, %c0_19] : memref<3x64x128xf32, #tpu.memory_space<vmem>>, vector<1x64x128xf32>
    %23 = vector.shape_cast %22 : vector<1x64x128xf32> to vector<64x128xf32>
    %cst_20 = arith.constant dense<0.000000e+00> : vector<8x128xf32>
    %24 = tpu.matmul %21, %23, %cst_20 {dimension_numbers = #tpu.dot_dimension_numbers<[1], [0], [0], [1], [0, 0, 1, 1], [], []>} : vector<8x64xf32>, vector<64x128xf32>, vector<8x128xf32> -> vector<8x128xf32>
    %25 = arith.addf %20, %24 : vector<8x128xf32>
    %c3 = arith.constant 3 : index
    %c0_21 = arith.constant 0 : index
    %26 = vector.load %arg13[%c3, %c0_21] : memref<12x64xf32, #tpu.memory_space<vmem>>, vector<8x64xf32>
    %c2_22 = arith.constant 2 : index
    %c0_23 = arith.constant 0 : index
    %c0_24 = arith.constant 0 : index
    %27 = vector.load %arg10[%c2_22, %c0_23, %c0_24] : memref<3x64x128xf32, #tpu.memory_space<vmem>>, vector<1x64x128xf32>
    %28 = vector.shape_cast %27 : vector<1x64x128xf32> to vector<64x128xf32>
    %cst_25 = arith.constant dense<0.000000e+00> : vector<8x128xf32>
    %29 = tpu.matmul %26, %28, %cst_25 {dimension_numbers = #tpu.dot_dimension_numbers<[1], [0], [0], [1], [0, 0, 1, 1], [], []>} : vector<8x64xf32>, vector<64x128xf32>, vector<8x128xf32> -> vector<8x128xf32>
    %30 = arith.addf %25, %29 : vector<8x128xf32>
    %c0_26 = arith.constant 0 : index
    %c0_27 = arith.constant 0 : index
    %31 = vector.load %arg11[%c0_26, %c0_27] : memref<1x128xf32, #tpu.memory_space<vmem>>, vector<1x128xf32>
    %32 = vector.broadcast %31 : vector<1x128xf32> to vector<8x128xf32>
    %33 = arith.addf %30, %32 : vector<8x128xf32>
    %c0_28 = arith.constant 0 : index
    %c0_29 = arith.constant 0 : index
    %34 = vector.load %arg13[%c0_28, %c0_29] : memref<12x64xf32, #tpu.memory_space<vmem>>, vector<12x64xf32>
    %cst_30 = arith.constant 0.000000e+00 : f32
    %35 = vector.broadcast %cst_30 : f32 to vector<12x64xf32>
    %36 = arith.maximumf %34, %35 : vector<12x64xf32>
    %cst_31 = arith.constant 0.000000e+00 : f32
    %37 = vector.broadcast %cst_31 : f32 to vector<12x64xf32>
    %38 = arith.minimumf %34, %37 : vector<12x64xf32>
    %39 = vector.broadcast %0 : f32 to vector<12x64xf32>
    %40 = arith.mulf %39, %38 : vector<12x64xf32>
    %41 = arith.addf %36, %40 : vector<12x64xf32>
    %c0_32 = arith.constant 0 : index
    %c0_33 = arith.constant 0 : index
    %42 = vector.load %arg13[%c0_32, %c0_33] : memref<12x64xf32, #tpu.memory_space<vmem>>, vector<12x64xf32>
    tpu.vector_store %arg13[%c0_32, %c0_33], %41 {strides = array<i32>} : memref<12x64xf32, #tpu.memory_space<vmem>>, vector<12x64xf32>,
    %c0_34 = arith.constant 0 : index
    %c0_35 = arith.constant 0 : index
    %43 = vector.load %arg13[%c0_34, %c0_35] : memref<12x64xf32, #tpu.memory_space<vmem>>, vector<10x64xf32>
    %c0_36 = arith.constant 0 : index
    %c0_37 = arith.constant 0 : index
    %c0_38 = arith.constant 0 : index
    %44 = vector.load %arg6[%c0_36, %c0_37, %c0_38] : memref<3x64x128xf32, #tpu.memory_space<vmem>>, vector<1x64x128xf32>
    %45 = vector.shape_cast %44 : vector<1x64x128xf32> to vector<64x128xf32>
    %cst_39 = arith.constant dense<0.000000e+00> : vector<10x128xf32>
    %46 = tpu.matmul %43, %45, %cst_39 {dimension_numbers = #tpu.dot_dimension_numbers<[1], [0], [0], [1], [0, 0, 1, 1], [], []>} : vector<10x64xf32>, vector<64x128xf32>, vector<10x128xf32> -> vector<10x128xf32>
    %c1_40 = arith.constant 1 : index
    %c0_41 = arith.constant 0 : index
    %47 = vector.load %arg13[%c1_40, %c0_41] : memref<12x64xf32, #tpu.memory_space<vmem>>, vector<10x64xf32>
    %c1_42 = arith.constant 1 : index
    %c0_43 = arith.constant 0 : index
    %c0_44 = arith.constant 0 : index
    %48 = vector.load %arg6[%c1_42, %c0_43, %c0_44] : memref<3x64x128xf32, #tpu.memory_space<vmem>>, vector<1x64x128xf32>
    %49 = vector.shape_cast %48 : vector<1x64x128xf32> to vector<64x128xf32>
    %cst_45 = arith.constant dense<0.000000e+00> : vector<10x128xf32>
    %50 = tpu.matmul %47, %49, %cst_45 {dimension_numbers = #tpu.dot_dimension_numbers<[1], [0], [0], [1], [0, 0, 1, 1], [], []>} : vector<10x64xf32>, vector<64x128xf32>, vector<10x128xf32> -> vector<10x128xf32>
    %51 = arith.addf %46, %50 : vector<10x128xf32>
    %c2_46 = arith.constant 2 : index
    %c0_47 = arith.constant 0 : index
    %52 = vector.load %arg13[%c2_46, %c0_47] : memref<12x64xf32, #tpu.memory_space<vmem>>, vector<10x64xf32>
    %c2_48 = arith.constant 2 : index
    %c0_49 = arith.constant 0 : index
    %c0_50 = arith.constant 0 : index
    %53 = vector.load %arg6[%c2_48, %c0_49, %c0_50] : memref<3x64x128xf32, #tpu.memory_space<vmem>>, vector<1x64x128xf32>
    %54 = vector.shape_cast %53 : vector<1x64x128xf32> to vector<64x128xf32>
    %cst_51 = arith.constant dense<0.000000e+00> : vector<10x128xf32>
    %55 = tpu.matmul %52, %54, %cst_51 {dimension_numbers = #tpu.dot_dimension_numbers<[1], [0], [0], [1], [0, 0, 1, 1], [], []>} : vector<10x64xf32>, vector<64x128xf32>, vector<10x128xf32> -> vector<10x128xf32>
    %56 = arith.addf %51, %55 : vector<10x128xf32>
    %c0_52 = arith.constant 0 : index
    %c0_53 = arith.constant 0 : index
    %57 = vector.load %arg7[%c0_52, %c0_53] : memref<1x128xf32, #tpu.memory_space<vmem>>, vector<1x128xf32>
    %58 = vector.broadcast %57 : vector<1x128xf32> to vector<10x128xf32>
    %59 = arith.addf %56, %58 : vector<10x128xf32>
    %cst_54 = arith.constant 0.000000e+00 : f32
    %60 = vector.broadcast %cst_54 : f32 to vector<10x128xf32>
    %61 = arith.maximumf %59, %60 : vector<10x128xf32>
    %cst_55 = arith.constant 0.000000e+00 : f32
    %62 = vector.broadcast %cst_55 : f32 to vector<10x128xf32>
    %63 = arith.minimumf %59, %62 : vector<10x128xf32>
    %64 = vector.broadcast %1 : f32 to vector<10x128xf32>
    %65 = arith.mulf %64, %63 : vector<10x128xf32>
    %66 = arith.addf %61, %65 : vector<10x128xf32>
    %c0_56 = arith.constant 0 : index
    %c0_57 = arith.constant 0 : index
    %67 = vector.load %arg14[%c0_56, %c0_57] : memref<10x128xf32, #tpu.memory_space<vmem>>, vector<10x128xf32>
    tpu.vector_store %arg14[%c0_56, %c0_57], %66 {strides = array<i32>} : memref<10x128xf32, #tpu.memory_space<vmem>>, vector<10x128xf32>,
    %c0_i32_58 = arith.constant 0 : i32
    %68 = arith.cmpi eq, %arg1, %c0_i32_58 : i32
    %69 = arith.extui %68 : i1 to i32
    %c0_i32_59 = arith.constant 0 : i32
    %70 = arith.cmpi ne, %69, %c0_i32_59 : i32
    scf.if %70 {
      %cst_85 = arith.constant 0.000000e+00 : f32
      %95 = vector.broadcast %cst_85 : f32 to vector<1x128xf32>
      %c0_86 = arith.constant 0 : index
      %c0_87 = arith.constant 0 : index
      %96 = vector.load %arg14[%c0_86, %c0_87] : memref<10x128xf32, #tpu.memory_space<vmem>>, vector<1x128xf32>
      tpu.vector_store %arg14[%c0_86, %c0_87], %95 {strides = array<i32>} : memref<10x128xf32, #tpu.memory_space<vmem>>, vector<1x128xf32>,
    } else {
    }
    %c1_i32_60 = arith.constant 1 : i32
    %71 = arith.cmpi eq, %arg1, %c1_i32_60 : i32
    %72 = arith.extui %71 : i1 to i32
    %c0_i32_61 = arith.constant 0 : i32
    %73 = arith.cmpi ne, %72, %c0_i32_61 : i32
    scf.if %73 {
      %cst_85 = arith.constant 0.000000e+00 : f32
      %95 = vector.broadcast %cst_85 : f32 to vector<1x128xf32>
      %c9 = arith.constant 9 : index
      %c0_86 = arith.constant 0 : index
      %96 = vector.load %arg14[%c9, %c0_86] : memref<10x128xf32, #tpu.memory_space<vmem>>, vector<1x128xf32>
      tpu.vector_store %arg14[%c9, %c0_86], %95 {strides = array<i32>} : memref<10x128xf32, #tpu.memory_space<vmem>>, vector<1x128xf32>,
    } else {
    }
    %c0_62 = arith.constant 0 : index
    %c0_63 = arith.constant 0 : index
    %74 = vector.load %arg14[%c0_62, %c0_63] : memref<10x128xf32, #tpu.memory_space<vmem>>, vector<8x128xf32>
    %c0_64 = arith.constant 0 : index
    %c0_65 = arith.constant 0 : index
    %c0_66 = arith.constant 0 : index
    %75 = vector.load %arg8[%c0_64, %c0_65, %c0_66] : memref<3x128x128xf32, #tpu.memory_space<vmem>>, vector<1x128x128xf32>
    %76 = vector.shape_cast %75 : vector<1x128x128xf32> to vector<128x128xf32>
    %cst_67 = arith.constant dense<0.000000e+00> : vector<8x128xf32>
    %77 = tpu.matmul %74, %76, %cst_67 {dimension_numbers = #tpu.dot_dimension_numbers<[1], [0], [0], [1], [0, 0, 1, 1], [], []>} : vector<8x128xf32>, vector<128x128xf32>, vector<8x128xf32> -> vector<8x128xf32>
    %c1_68 = arith.constant 1 : index
    %c0_69 = arith.constant 0 : index
    %78 = vector.load %arg14[%c1_68, %c0_69] : memref<10x128xf32, #tpu.memory_space<vmem>>, vector<8x128xf32>
    %c1_70 = arith.constant 1 : index
    %c0_71 = arith.constant 0 : index
    %c0_72 = arith.constant 0 : index
    %79 = vector.load %arg8[%c1_70, %c0_71, %c0_72] : memref<3x128x128xf32, #tpu.memory_space<vmem>>, vector<1x128x128xf32>
    %80 = vector.shape_cast %79 : vector<1x128x128xf32> to vector<128x128xf32>
    %cst_73 = arith.constant dense<0.000000e+00> : vector<8x128xf32>
    %81 = tpu.matmul %78, %80, %cst_73 {dimension_numbers = #tpu.dot_dimension_numbers<[1], [0], [0], [1], [0, 0, 1, 1], [], []>} : vector<8x128xf32>, vector<128x128xf32>, vector<8x128xf32> -> vector<8x128xf32>
    %82 = arith.addf %77, %81 : vector<8x128xf32>
    %c2_74 = arith.constant 2 : index
    %c0_75 = arith.constant 0 : index
    %83 = vector.load %arg14[%c2_74, %c0_75] : memref<10x128xf32, #tpu.memory_space<vmem>>, vector<8x128xf32>
    %c2_76 = arith.constant 2 : index
    %c0_77 = arith.constant 0 : index
    %c0_78 = arith.constant 0 : index
    %84 = vector.load %arg8[%c2_76, %c0_77, %c0_78] : memref<3x128x128xf32, #tpu.memory_space<vmem>>, vector<1x128x128xf32>
    %85 = vector.shape_cast %84 : vector<1x128x128xf32> to vector<128x128xf32>
    %cst_79 = arith.constant dense<0.000000e+00> : vector<8x128xf32>
    %86 = tpu.matmul %83, %85, %cst_79 {dimension_numbers = #tpu.dot_dimension_numbers<[1], [0], [0], [1], [0, 0, 1, 1], [], []>} : vector<8x128xf32>, vector<128x128xf32>, vector<8x128xf32> -> vector<8x128xf32>
    %87 = arith.addf %82, %86 : vector<8x128xf32>
    %c0_80 = arith.constant 0 : index
    %c0_81 = arith.constant 0 : index
    %88 = vector.load %arg9[%c0_80, %c0_81] : memref<1x128xf32, #tpu.memory_space<vmem>>, vector<1x128xf32>
    %89 = vector.broadcast %88 : vector<1x128xf32> to vector<8x128xf32>
    %90 = arith.addf %87, %89 : vector<8x128xf32>
    %91 = arith.addf %90, %33 : vector<8x128xf32>
    %c0_82 = arith.constant 0 : index
    %c0_83 = arith.constant 0 : index
    %c0_84 = arith.constant 0 : index
    %92 = vector.load %arg12[%c0_82, %c0_83, %c0_84] : memref<1x8x128xf32, #tpu.memory_space<vmem>>, vector<1x8x128xf32>
    %93 = vector.shape_cast %92 : vector<1x8x128xf32> to vector<8x128xf32>
    %94 = vector.shape_cast %91 : vector<8x128xf32> to vector<1x8x128xf32>
    tpu.vector_store %arg12[%c0_82, %c0_83, %c0_84], %94 {strides = array<i32>} : memref<1x8x128xf32, #tpu.memory_space<vmem>>, vector<1x8x128xf32>,
    return
  }
  func.func @transform_0(%arg0: i32, %arg1: i32) -> i32 {
    %c0_i32 = arith.constant 0 : i32
    %c0_i32_0 = arith.constant 0 : i32
    return %c0_i32 : i32
  }
  func.func @transform_1(%arg0: i32, %arg1: i32) -> (i32, i32, i32) {
    %c0_i32 = arith.constant 0 : i32
    %c0_i32_0 = arith.constant 0 : i32
    return %arg0, %arg1, %c0_i32 : i32, i32, i32
  }
  func.func @transform_2(%arg0: i32, %arg1: i32) -> (i32, i32, i32) {
    %c1_i32 = arith.constant 1 : i32
    %0 = arith.muli %arg1, %c1_i32 : i32
    %c1_i32_0 = arith.constant 1 : i32
    %1 = arith.subi %0, %c1_i32_0 : i32
    %c0_i32 = arith.constant 0 : i32
    %2 = arith.maxsi %1, %c0_i32 : i32
    %c0_i32_1 = arith.constant 0 : i32
    %c0_i32_2 = arith.constant 0 : i32
    return %arg0, %2, %c0_i32_1 : i32, i32, i32
  }
  func.func @transform_3(%arg0: i32, %arg1: i32) -> (i32, i32, i32) {
    %c1_i32 = arith.constant 1 : i32
    %0 = arith.addi %arg1, %c1_i32 : i32
    %c1_i32_0 = arith.constant 1 : i32
    %1 = arith.muli %0, %c1_i32_0 : i32
    %c1_i32_1 = arith.constant 1 : i32
    %2 = arith.minsi %1, %c1_i32_1 : i32
    %c0_i32 = arith.constant 0 : i32
    %c0_i32_2 = arith.constant 0 : i32
    return %arg0, %2, %c0_i32 : i32, i32, i32
  }
  func.func @transform_4(%arg0: i32, %arg1: i32) -> (i32, i32, i32) {
    %c0_i32 = arith.constant 0 : i32
    %c0_i32_0 = arith.constant 0 : i32
    %c0_i32_1 = arith.constant 0 : i32
    %c0_i32_2 = arith.constant 0 : i32
    return %c0_i32, %c0_i32_0, %c0_i32_1 : i32, i32, i32
  }
  func.func @transform_5(%arg0: i32, %arg1: i32) -> (i32, i32) {
    %c0_i32 = arith.constant 0 : i32
    %c0_i32_0 = arith.constant 0 : i32
    %c0_i32_1 = arith.constant 0 : i32
    return %c0_i32, %c0_i32_0 : i32, i32
  }
  func.func @transform_6(%arg0: i32, %arg1: i32) -> (i32, i32, i32) {
    %c0_i32 = arith.constant 0 : i32
    %c0_i32_0 = arith.constant 0 : i32
    %c0_i32_1 = arith.constant 0 : i32
    %c0_i32_2 = arith.constant 0 : i32
    return %c0_i32, %c0_i32_0, %c0_i32_1 : i32, i32, i32
  }
  func.func @transform_7(%arg0: i32, %arg1: i32) -> (i32, i32) {
    %c0_i32 = arith.constant 0 : i32
    %c0_i32_0 = arith.constant 0 : i32
    %c0_i32_1 = arith.constant 0 : i32
    return %c0_i32, %c0_i32_0 : i32, i32
  }
  func.func @transform_8(%arg0: i32, %arg1: i32) -> (i32, i32, i32) {
    %c0_i32 = arith.constant 0 : i32
    %c0_i32_0 = arith.constant 0 : i32
    %c0_i32_1 = arith.constant 0 : i32
    %c0_i32_2 = arith.constant 0 : i32
    return %c0_i32, %c0_i32_0, %c0_i32_1 : i32, i32, i32
  }
  func.func @transform_9(%arg0: i32, %arg1: i32) -> (i32, i32) {
    %c0_i32 = arith.constant 0 : i32
    %c0_i32_0 = arith.constant 0 : i32
    %c0_i32_1 = arith.constant 0 : i32
    return %c0_i32, %c0_i32_0 : i32, i32
  }
  func.func @transform_10(%arg0: i32, %arg1: i32) -> (i32, i32, i32) {
    %c0_i32 = arith.constant 0 : i32
    %c0_i32_0 = arith.constant 0 : i32
    return %arg0, %arg1, %c0_i32 : i32, i32, i32
  }
}

</mosaic_0001>

<llo_original>
// kernel: tpu_custom_call.1
$region0: #{tpu_custom_call.1}
  #allocation0 [shape = 'u32[]', space=smem, size = 0x4, offset = 0x4, fixed_abs, tag = 'smem constant byte address 0x4 - core index']
  #allocation1 [shape = 'u32[144,128]{1,0:T(1,128)}', space=vmem, size = 0x12000, scoped, tag = 'internal scratch']
  #allocation2 [shape = 'f32[12,64]{1,0:T(8,128)}', space=vmem, size = 0x2000, scoped, tag = 'scratch operand']
  #allocation3 [shape = 'f32[10,128]{1,0:T(8,128)}', space=vmem, size = 0x2000, scoped, tag = 'scratch operand']
  %s0 = inlined_call_operand.hbm [shape: f32[2], index: 0, kind: input, shape index: {}]
  %s1 = inlined_call_operand.hbm [shape: f32[2,16,64], index: 1, kind: input, shape index: {}]
  %s2 = inlined_call_operand.hbm [shape: f32[2,16,64], index: 2, kind: input, shape index: {}]
  %s3 = inlined_call_operand.hbm [shape: f32[2,16,64], index: 3, kind: input, shape index: {}]
  %s4 = inlined_call_operand.hbm [shape: f32[3,64,128], index: 4, kind: input, shape index: {}]
  %s5 = inlined_call_operand.vmem [shape: f32[1,128], index: 5, kind: input, shape index: {}]
  %s6 = inlined_call_operand.hbm [shape: f32[3,128,128], index: 6, kind: input, shape index: {}]
  %s7 = inlined_call_operand.vmem [shape: f32[1,128], index: 7, kind: input, shape index: {}]
  %s8 = inlined_call_operand.hbm [shape: f32[3,64,128], index: 8, kind: input, shape index: {}]
  %s9 = inlined_call_operand.vmem [shape: f32[1,128], index: 9, kind: input, shape index: {}]
  %s10 = inlined_call_operand.hbm [shape: f32[2,16,128], index: 10, kind: output, shape index: {}]
  %s11 = sld [smem:[#allocation0]]
  $region125: #{tpu_custom_call.1} parent=0
    _
  %s13 = ssub.s32 1, %s11
  %s14 = scalar_select 0, %s13, %s11
  $region1: #{tpu_custom_call.1} parent=0
    #allocation4 [shape = 'u8[512]{0}', space=smem, size = 0x200, scoped, tag = 'input window, operand 0, single buffered']
    #allocation5 [shape = 's32[2]{0}', space=sflag, size = 0x8, scoped, tag = 'scoped memory for tpu_custom_call.1']
    #allocation6 [shape = 's32[2]{0}', space=sflag, size = 0x8, scoped, tag = 'scoped memory for tpu_custom_call.1']
    #allocation7 [shape = 's32[2]{0}', space=sflag, size = 0x8, scoped, tag = 'scoped memory for tpu_custom_call.1']
    #allocation8 [shape = 'u8[8192]{0}', space=vmem, size = 0x2000, scoped, tag = 'input window, operand 1']
    #allocation9 [shape = 'u8[8192]{0}', space=vmem, size = 0x2000, scoped, tag = 'input window, operand 2']
    #allocation10 [shape = 's32[2]{0}', space=sflag, size = 0x8, scoped, tag = 'scoped memory for tpu_custom_call.1']
    #allocation11 [shape = 'u8[8192]{0}', space=vmem, size = 0x2000, scoped, tag = 'input window, operand 3']
    #allocation12 [shape = 'u8[98304]{0}', space=vmem, size = 0x18000, scoped, tag = 'input window, operand 4, single buffered']
    #allocation13 [shape = 's32[1]{0}', space=sflag, size = 0x4, scoped, tag = 'scoped memory for tpu_custom_call.1']
    #allocation14 [shape = 'u8[196608]{0}', space=vmem, size = 0x30000, scoped, tag = 'input window, operand 6, single buffered']
    #allocation15 [shape = 'u8[98304]{0}', space=vmem, size = 0x18000, scoped, tag = 'input window, operand 8, single buffered']
    #allocation16 [shape = 's32[1]{0}', space=sflag, size = 0x4, scoped, tag = 'scoped memory for tpu_custom_call.1']
    #allocation17 [shape = 'u8[8192]{0}', space=vmem, size = 0x2000, scoped, tag = 'output window, operand 0']
    %15 = vsyncpa [#allocation7], 0
    %16 = vsyncpa [#allocation5], 0
    %s17 = scalar_lea.sflag [#allocation5], 1
    %18 = vsyncpa %s17, 0
    %19 = vsyncpa [#allocation10], 0
    %s20 = scalar_lea.sflag [#allocation10], 1
    %21 = vsyncpa %s20, 0
    %22 = vsyncpa [#allocation13], 0
    %23 = vsyncpa [#allocation16], 0
    %24 = vsyncpa [#allocation6], 0
    %s25 = scalar_lea.sflag [#allocation6], 1
    %26 = vsyncpa %s25, 0
    loop: start=0, step=1, limit=6
    $region2: #{tpu_custom_call.1} parent=1 // loop_pre_header
      _
    $region3: #{tpu_custom_call.1} parent=1 // loop_header
      %s28 = sphi 0, %s32
      %p29 = scmp.ge.s32.totalorder %s28, 6
      %s35 = sphi 0, %s47
      %s36 = sphi 0, %s43
      %s37 = sphi 0, %s35
      %s38 = sphi 0, %s36
      %s39 = sphi 0, %s37
      %s40 = sphi 0, %s38
      %s48 = sphi 0, %s48
      %s50 = sphi 0, %s48
      %s51 = sphi 0, %s50
      %s65 = sphi 0, %s51
      %s73 = sphi 0, %s75
      %s76 = sphi 0, %s73
      %s77 = sphi 0, %s76
      %s93 = sphi 0, %s77
      %s107 = sphi 0, %s109
      %s110 = sphi 0, %s107
      %s111 = sphi 0, %s110
      %s127 = sphi 0, %s111
      %s141 = sphi 0, %s143
      %s144 = sphi 0, %s141
      %s145 = sphi 0, %s144
      %s161 = sphi 0, %s145
      %s165 = sphi 0, %s165
      %s167 = sphi 0, %s165
      %s168 = sphi 0, %s167
      %s182 = sphi 0, %s168
      %s186 = sphi 0, %s186
      %s188 = sphi 0, %s186
      %s189 = sphi 0, %s188
      %s203 = sphi 0, %s189
      %s207 = sphi 0, %s207
      %s209 = sphi 0, %s207
      %s210 = sphi 0, %s209
      %s224 = sphi 0, %s210
      %s228 = sphi 0, %s228
      %s230 = sphi 0, %s228
      %s231 = sphi 0, %s230
      %s245 = sphi 0, %s231
      %s249 = sphi 0, %s249
      %s251 = sphi 0, %s249
      %s252 = sphi 0, %s251
      %s266 = sphi 0, %s252
      %s270 = sphi 0, %s270
      %s272 = sphi 0, %s270
      %s273 = sphi 0, %s272
      %s287 = sphi 0, %s273
      %s295 = sphi 0, %s297
      %s298 = sphi 0, %s295
      %s299 = sphi 0, %s298
      %s315 = sphi 0, %s299
    $region4: #{tpu_custom_call.1} parent=1 // loop_header_branch
      %31 = sbr.rel (%p29) target = $region8
    $region5: #{tpu_custom_call.1} parent=1 // loop_body
      %s33 = ssub.s32 %s28, 1
      %s34 = ssub.s32 %s28, 2
      %s41 = sadd.s32 1, %s36
      %p42 = scmp.ge.s32.totalorder %s41, 2
      %s43 = scalar_select %p42, 0, %s41
      %s44 = sadd.s32 1, %s35
      %s45 = scalar_select %p42, %s44, %s35
      %p46 = scmp.ge.s32.totalorder %s45, 2
      %s47 = scalar_select %p46, 0, %s45
      %s49 = sadd.s32 %s48, 1
      %p52 = scmp.eq.s32.totalorder %s28, 3
      %p53 = scmp.ne.s32.totalorder %s48, %s50
      %p54 = scmp.eq.s32.totalorder %s28, 0
      %p55 = por %p53, %p54
      %p56 = scmp.ne.s32.totalorder %s48, %s50
      %p57 = scmp.eq.s32.totalorder %s33, 3
      %p58 = por %p56, %p57
      %p59 = scmp.ne.s32.totalorder %s50, %s51
      %p60 = scmp.eq.s32.totalorder %s33, 0
      %p61 = por %p59, %p60
      %p62 = scmp.ne.s32.totalorder %s50, %s51
      %p63 = scmp.eq.s32.totalorder %s34, 3
      %p64 = por %p62, %p63
      %p66 = scmp.ne.s32.totalorder %s51, %s65
      %p67 = scmp.eq.s32.totalorder %s34, 0
      %p68 = por %p66, %p67
      %s69 = ssub.s32 %s35, %s47
      %s70 = ssub.s32 %s36, %s43
      %s71 = sor.u32 %s69, %s70
      %p72 = scmp.eq.s32.totalorder %s71, 0
      %s74 = sadd.s32 %s73, 1
      %s75 = scalar_select %p72, %s73, %s74
      %p78 = pneg %p72
      %p79 = scmp.eq.s32.totalorder %s28, 3
      %p80 = por %p78, %p79
      %p81 = scmp.ne.s32.totalorder %s73, %s76
      %p82 = scmp.eq.s32.totalorder %s28, 0
      %p83 = por %p81, %p82
      %p84 = scmp.ne.s32.totalorder %s73, %s76
      %p85 = scmp.eq.s32.totalorder %s33, 3
      %p86 = por %p84, %p85
      %p87 = scmp.ne.s32.totalorder %s76, %s77
      %p88 = scmp.eq.s32.totalorder %s33, 0
      %p89 = por %p87, %p88
      %p90 = scmp.ne.s32.totalorder %s76, %s77
      %p91 = scmp.eq.s32.totalorder %s34, 3
      %p92 = por %p90, %p91
      %p94 = scmp.ne.s32.totalorder %s77, %s93
      %p95 = scmp.eq.s32.totalorder %s34, 0
      %p96 = por %p94, %p95
      %s97 = ssub.s32 %s36, 1
      %p98 = scmp.gt.s32.totalorder %s97, 0
      %s99 = scalar_select %p98, %s97, 0
      %s100 = ssub.s32 %s43, 1
      %p101 = scmp.gt.s32.totalorder %s100, 0
      %s102 = scalar_select %p101, %s100, 0
      %s103 = ssub.s32 %s35, %s47
      %s104 = ssub.s32 %s99, %s102
      %s105 = sor.u32 %s103, %s104
      %p106 = scmp.eq.s32.totalorder %s105, 0
      %s108 = sadd.s32 %s107, 1
      %s109 = scalar_select %p106, %s107, %s108
      %p112 = pneg %p106
      %p113 = scmp.eq.s32.totalorder %s28, 3
      %p114 = por %p112, %p113
      %p115 = scmp.ne.s32.totalorder %s107, %s110
      %p116 = scmp.eq.s32.totalorder %s28, 0
      %p117 = por %p115, %p116
      %p118 = scmp.ne.s32.totalorder %s107, %s110
      %p119 = scmp.eq.s32.totalorder %s33, 3
      %p120 = por %p118, %p119
      %p121 = scmp.ne.s32.totalorder %s110, %s111
      %p122 = scmp.eq.s32.totalorder %s33, 0
      %p123 = por %p121, %p122
      %p124 = scmp.ne.s32.totalorder %s110, %s111
      %p125 = scmp.eq.s32.totalorder %s34, 3
      %p126 = por %p124, %p125
      %p128 = scmp.ne.s32.totalorder %s111, %s127
      %p129 = scmp.eq.s32.totalorder %s34, 0
      %p130 = por %p128, %p129
      %s131 = sadd.s32 %s36, 1
      %p132 = scmp.lt.s32.totalorder %s131, 1
      %s133 = scalar_select %p132, %s131, 1
      %s134 = sadd.s32 %s43, 1
      %p135 = scmp.lt.s32.totalorder %s134, 1
      %s136 = scalar_select %p135, %s134, 1
      %s137 = ssub.s32 %s35, %s47
      %s138 = ssub.s32 %s133, %s136
      %s139 = sor.u32 %s137, %s138
      %p140 = scmp.eq.s32.totalorder %s139, 0
      %s142 = sadd.s32 %s141, 1
      %s143 = scalar_select %p140, %s141, %s142
      %p146 = pneg %p140
      %p147 = scmp.eq.s32.totalorder %s28, 3
      %p148 = por %p146, %p147
      %p149 = scmp.ne.s32.totalorder %s141, %s144
      %p150 = scmp.eq.s32.totalorder %s28, 0
      %p151 = por %p149, %p150
      %p152 = scmp.ne.s32.totalorder %s141, %s144
      %p153 = scmp.eq.s32.totalorder %s33, 3
      %p154 = por %p152, %p153
      %p155 = scmp.ne.s32.totalorder %s144, %s145
      %p156 = scmp.eq.s32.totalorder %s33, 0
      %p157 = por %p155, %p156
      %p158 = scmp.ne.s32.totalorder %s144, %s145
      %p159 = scmp.eq.s32.totalorder %s34, 3
      %p160 = por %p158, %p159
      %p162 = scmp.ne.s32.totalorder %s145, %s161
      %p163 = scmp.eq.s32.totalorder %s34, 0
      %p164 = por %p162, %p163
      %s166 = sadd.s32 %s165, 1
      %p169 = scmp.eq.s32.totalorder %s28, 3
      %p170 = scmp.ne.s32.totalorder %s165, %s167
      %p171 = scmp.eq.s32.totalorder %s28, 0
      %p172 = por %p170, %p171
      %p173 = scmp.ne.s32.totalorder %s165, %s167
      %p174 = scmp.eq.s32.totalorder %s33, 3
      %p175 = por %p173, %p174
      %p176 = scmp.ne.s32.totalorder %s167, %s168
      %p177 = scmp.eq.s32.totalorder %s33, 0
      %p178 = por %p176, %p177
      %p179 = scmp.ne.s32.totalorder %s167, %s168
      %p180 = scmp.eq.s32.totalorder %s34, 3
      %p181 = por %p179, %p180
      %p183 = scmp.ne.s32.totalorder %s168, %s182
      %p184 = scmp.eq.s32.totalorder %s34, 0
      %p185 = por %p183, %p184
      %s187 = sadd.s32 %s186, 1
      %p190 = scmp.eq.s32.totalorder %s28, 3
      %p191 = scmp.ne.s32.totalorder %s186, %s188
      %p192 = scmp.eq.s32.totalorder %s28, 0
      %p193 = por %p191, %p192
      %p194 = scmp.ne.s32.totalorder %s186, %s188
      %p195 = scmp.eq.s32.totalorder %s33, 3
      %p196 = por %p194, %p195
      %p197 = scmp.ne.s32.totalorder %s188, %s189
      %p198 = scmp.eq.s32.totalorder %s33, 0
      %p199 = por %p197, %p198
      %p200 = scmp.ne.s32.totalorder %s188, %s189
      %p201 = scmp.eq.s32.totalorder %s34, 3
      %p202 = por %p200, %p201
      %p204 = scmp.ne.s32.totalorder %s189, %s203
      %p205 = scmp.eq.s32.totalorder %s34, 0
      %p206 = por %p204, %p205
      %s208 = sadd.s32 %s207, 1
      %p211 = scmp.eq.s32.totalorder %s28, 3
      %p212 = scmp.ne.s32.totalorder %s207, %s209
      %p213 = scmp.eq.s32.totalorder %s28, 0
      %p214 = por %p212, %p213
      %p215 = scmp.ne.s32.totalorder %s207, %s209
      %p216 = scmp.eq.s32.totalorder %s33, 3
      %p217 = por %p215, %p216
      %p218 = scmp.ne.s32.totalorder %s209, %s210
      %p219 = scmp.eq.s32.totalorder %s33, 0
      %p220 = por %p218, %p219
      %p221 = scmp.ne.s32.totalorder %s209, %s210
      %p222 = scmp.eq.s32.totalorder %s34, 3
      %p223 = por %p221, %p222
      %p225 = scmp.ne.s32.totalorder %s210, %s224
      %p226 = scmp.eq.s32.totalorder %s34, 0
      %p227 = por %p225, %p226
      %s229 = sadd.s32 %s228, 1
      %p232 = scmp.eq.s32.totalorder %s28, 3
      %p233 = scmp.ne.s32.totalorder %s228, %s230
      %p234 = scmp.eq.s32.totalorder %s28, 0
      %p235 = por %p233, %p234
      %p236 = scmp.ne.s32.totalorder %s228, %s230
      %p237 = scmp.eq.s32.totalorder %s33, 3
      %p238 = por %p236, %p237
      %p239 = scmp.ne.s32.totalorder %s230, %s231
      %p240 = scmp.eq.s32.totalorder %s33, 0
      %p241 = por %p239, %p240
      %p242 = scmp.ne.s32.totalorder %s230, %s231
      %p243 = scmp.eq.s32.totalorder %s34, 3
      %p244 = por %p242, %p243
      %p246 = scmp.ne.s32.totalorder %s231, %s245
      %p247 = scmp.eq.s32.totalorder %s34, 0
      %p248 = por %p246, %p247
      %s250 = sadd.s32 %s249, 1
      %p253 = scmp.eq.s32.totalorder %s28, 3
      %p254 = scmp.ne.s32.totalorder %s249, %s251
      %p255 = scmp.eq.s32.totalorder %s28, 0
      %p256 = por %p254, %p255
      %p257 = scmp.ne.s32.totalorder %s249, %s251
      %p258 = scmp.eq.s32.totalorder %s33, 3
      %p259 = por %p257, %p258
      %p260 = scmp.ne.s32.totalorder %s251, %s252
      %p261 = scmp.eq.s32.totalorder %s33, 0
      %p262 = por %p260, %p261
      %p263 = scmp.ne.s32.totalorder %s251, %s252
      %p264 = scmp.eq.s32.totalorder %s34, 3
      %p265 = por %p263, %p264
      %p267 = scmp.ne.s32.totalorder %s252, %s266
      %p268 = scmp.eq.s32.totalorder %s34, 0
      %p269 = por %p267, %p268
      %s271 = sadd.s32 %s270, 1
      %p274 = scmp.eq.s32.totalorder %s28, 3
      %p275 = scmp.ne.s32.totalorder %s270, %s272
      %p276 = scmp.eq.s32.totalorder %s28, 0
      %p277 = por %p275, %p276
      %p278 = scmp.ne.s32.totalorder %s270, %s272
      %p279 = scmp.eq.s32.totalorder %s33, 3
      %p280 = por %p278, %p279
      %p281 = scmp.ne.s32.totalorder %s272, %s273
      %p282 = scmp.eq.s32.totalorder %s33, 0
      %p283 = por %p281, %p282
      %p284 = scmp.ne.s32.totalorder %s272, %s273
      %p285 = scmp.eq.s32.totalorder %s34, 3
      %p286 = por %p284, %p285
      %p288 = scmp.ne.s32.totalorder %s273, %s287
      %p289 = scmp.eq.s32.totalorder %s34, 0
      %p290 = por %p288, %p289
      %s291 = ssub.s32 %s35, %s47
      %s292 = ssub.s32 %s36, %s43
      %s293 = sor.u32 %s291, %s292
      %p294 = scmp.eq.s32.totalorder %s293, 0
      %s296 = sadd.s32 %s295, 1
      %s297 = scalar_select %p294, %s295, %s296
      %p300 = pneg %p294
      %p301 = scmp.eq.s32.totalorder %s28, 3
      %p302 = por %p300, %p301
      %p303 = scmp.ne.s32.totalorder %s295, %s298
      %p304 = scmp.eq.s32.totalorder %s28, 0
      %p305 = por %p303, %p304
      %p306 = scmp.ne.s32.totalorder %s295, %s298
      %p307 = scmp.eq.s32.totalorder %s33, 3
      %p308 = por %p306, %p307
      %p309 = scmp.ne.s32.totalorder %s298, %s299
      %p310 = scmp.eq.s32.totalorder %s33, 0
      %p311 = por %p309, %p310
      %p312 = scmp.ne.s32.totalorder %s298, %s299
      %p313 = scmp.eq.s32.totalorder %s34, 3
      %p314 = por %p312, %p313
      %p316 = scmp.ne.s32.totalorder %s299, %s315
      %p317 = scmp.eq.s32.totalorder %s34, 0
      %p318 = por %p316, %p317
      %p319 = scmp.le.s32.totalorder 1, %s28
      %p320 = scmp.lt.s32.totalorder %s28, 5
      %p321 = pnand %p319, %p320
      %p322 = pneg %p321
      // Predicated region
      $region9: #{tpu_custom_call.1} parent=5 // pred_check
        _
      $region10: #{tpu_custom_call.1} parent=5 // pred_check_branch
        %324 = sbr.rel (%p321) target = $region12
      $region11: #{tpu_custom_call.1} parent=5 // pred_region
        %s325 = ssub.s32 %s28, 1
        // Predicated region
        $region13: #{tpu_custom_call.1} parent=11 // pred_check
          %p326 = pneg %p61
        $region14: #{tpu_custom_call.1} parent=11 // pred_check_branch
          %328 = sbr.rel (%p326) target = $region16
        $region15: #{tpu_custom_call.1} parent=11 // pred_region
          %s330 = ssub.s32 16, 16
          %331 = vsyncadd [#allocation7], %s330
          %334 = dma.hbm_to_smem %s0, 16, [#allocation4], [#allocation7]
        $region16: #{tpu_custom_call.1} parent=11 // pred_fallthru
          _
        // Predicated region
        $region17: #{tpu_custom_call.1} parent=11 // pred_check
          %p335 = pneg %p178
        $region18: #{tpu_custom_call.1} parent=11 // pred_check_branch
          %337 = sbr.rel (%p335) target = $region20
        $region19: #{tpu_custom_call.1} parent=11 // pred_region
          %s339 = ssub.s32 3072, 3072
          %340 = vsyncadd [#allocation13], %s339
          %s341 = sshll.u32 [#allocation12], 4
          %s342 = int_to_ptr.vmem [resolvable:$true] %s341
          %347 = dma.hbm_to_vmem [thread:$0]  %s4, 3072, %s342, [#allocation13], 128, 128, 8
        $region20: #{tpu_custom_call.1} parent=11 // pred_fallthru
          _
        // Predicated region
        $region21: #{tpu_custom_call.1} parent=11 // pred_check
          %p348 = pneg %p199
        $region22: #{tpu_custom_call.1} parent=11 // pred_check_branch
          %350 = sbr.rel (%p348) target = $region24
        $region23: #{tpu_custom_call.1} parent=11 // pred_region
          _
        $region24: #{tpu_custom_call.1} parent=11 // pred_fallthru
          _
        // Predicated region
        $region25: #{tpu_custom_call.1} parent=11 // pred_check
          %p351 = pneg %p220
        $region26: #{tpu_custom_call.1} parent=11 // pred_check_branch
          %353 = sbr.rel (%p351) target = $region28
        $region27: #{tpu_custom_call.1} parent=11 // pred_region
          %s355 = ssub.s32 6144, 6144
          %356 = vsyncadd [#allocation13], %s355
          %s357 = sshll.u32 [#allocation14], 4
          %s358 = int_to_ptr.vmem [resolvable:$true] %s357
          %363 = dma.hbm_to_vmem [thread:$0]  %s6, 6144, %s358, [#allocation13], 128, 128, 8
        $region28: #{tpu_custom_call.1} parent=11 // pred_fallthru
          _
        // Predicated region
        $region29: #{tpu_custom_call.1} parent=11 // pred_check
          %p364 = pneg %p241
        $region30: #{tpu_custom_call.1} parent=11 // pred_check_branch
          %366 = sbr.rel (%p364) target = $region32
        $region31: #{tpu_custom_call.1} parent=11 // pred_region
          _
        $region32: #{tpu_custom_call.1} parent=11 // pred_fallthru
          _
        // Predicated region
        $region33: #{tpu_custom_call.1} parent=11 // pred_check
          %p367 = pneg %p262
        $region34: #{tpu_custom_call.1} parent=11 // pred_check_branch
          %369 = sbr.rel (%p367) target = $region36
        $region35: #{tpu_custom_call.1} parent=11 // pred_region
          %s371 = ssub.s32 3072, 3072
          %372 = vsyncadd [#allocation16], %s371
          %s373 = sshll.u32 [#allocation15], 4
          %s374 = int_to_ptr.vmem [resolvable:$true] %s373
          %379 = dma.hbm_to_vmem [thread:$0]  %s8, 3072, %s374, [#allocation16], 128, 128, 8
        $region36: #{tpu_custom_call.1} parent=11 // pred_fallthru
          _
        // Predicated region
        $region37: #{tpu_custom_call.1} parent=11 // pred_check
          %p380 = pneg %p283
        $region38: #{tpu_custom_call.1} parent=11 // pred_check_branch
          %382 = sbr.rel (%p380) target = $region40
        $region39: #{tpu_custom_call.1} parent=11 // pred_region
          _
        $region40: #{tpu_custom_call.1} parent=11 // pred_fallthru
          _
      $region12: #{tpu_custom_call.1} parent=5 // pred_fallthru
        _
      %p383 = scmp.lt.s32.totalorder %s28, 4
      // Predicated region
      $region41: #{tpu_custom_call.1} parent=5 // pred_check
        %p384 = pneg %p383
      $region42: #{tpu_custom_call.1} parent=5 // pred_check_branch
        %386 = sbr.rel (%p384) target = $region44
      $region43: #{tpu_custom_call.1} parent=5 // pred_region
        // Predicated region
        $region45: #{tpu_custom_call.1} parent=43 // pred_check
          %p387 = pneg %p83
        $region46: #{tpu_custom_call.1} parent=43 // pred_check_branch
          %389 = sbr.rel (%p387) target = $region48
        $region47: #{tpu_custom_call.1} parent=43 // pred_region
          %s390 = sand.u32 %s73, 1
          %s391 = scalar_lea.sflag [#allocation5], %s390
          %s392 = sand.u32 %s73, 1
          %s393 = smul.addr %s392, 8
          %s394 = scalar_lea.vmem [#allocation8], %s393
          %s396 = ssub.s32 128, 128
          %397 = vsyncadd %s391, %s396
          %s398 = smul.addr %s35, 2
          %s399 = sadd.s32 %s36, %s398
          %s400 = smul.addr %s399, 128
          %s401 = scalar_lea.hbm %s1, %s400
          %s403 = sshll.u32 %s394, 4
          %s404 = int_to_ptr.vmem [resolvable:$true] %s403
          %406 = dma.hbm_to_vmem [thread:$0]  %s401, 128, %s404, %s391
        $region48: #{tpu_custom_call.1} parent=43 // pred_fallthru
          _
        // Predicated region
        $region49: #{tpu_custom_call.1} parent=43 // pred_check
          %p407 = pneg %p117
        $region50: #{tpu_custom_call.1} parent=43 // pred_check_branch
          %409 = sbr.rel (%p407) target = $region52
        $region51: #{tpu_custom_call.1} parent=43 // pred_region
          %s410 = sand.u32 %s28, 1
          %s411 = scalar_lea.sflag [#allocation10], %s410
          %s412 = sand.u32 %s107, 1
          %s413 = smul.addr %s412, 8
          %s414 = scalar_lea.vmem [#allocation9], %s413
          %s415 = ssub.s32 %s36, 1
          %p416 = scmp.gt.s32.totalorder %s415, 0
          %s417 = scalar_select %p416, %s415, 0
          %s419 = ssub.s32 128, 128
          %420 = vsyncadd %s411, %s419
          %s421 = smul.addr %s35, 2
          %s422 = sadd.s32 %s417, %s421
          %s423 = smul.addr %s422, 128
          %s424 = scalar_lea.hbm %s2, %s423
          %s426 = sshll.u32 %s414, 4
          %s427 = int_to_ptr.vmem [resolvable:$true] %s426
          %429 = dma.hbm_to_vmem [thread:$0]  %s424, 128, %s427, %s411
        $region52: #{tpu_custom_call.1} parent=43 // pred_fallthru
          _
        // Predicated region
        $region53: #{tpu_custom_call.1} parent=43 // pred_check
          %p430 = pneg %p151
        $region54: #{tpu_custom_call.1} parent=43 // pred_check_branch
          %432 = sbr.rel (%p430) target = $region56
        $region55: #{tpu_custom_call.1} parent=43 // pred_region
          %s433 = sand.u32 %s28, 1
          %s434 = scalar_lea.sflag [#allocation10], %s433
          %s435 = sand.u32 %s141, 1
          %s436 = smul.addr %s435, 8
          %s437 = scalar_lea.vmem [#allocation11], %s436
          %s438 = sadd.s32 %s36, 1
          %p439 = scmp.lt.s32.totalorder %s438, 1
          %s440 = scalar_select %p439, %s438, 1
          %s442 = ssub.s32 128, 128
          %443 = vsyncadd %s434, %s442
          %s444 = smul.addr %s35, 2
          %s445 = sadd.s32 %s440, %s444
          %s446 = smul.addr %s445, 128
          %s447 = scalar_lea.hbm %s3, %s446
          %s449 = sshll.u32 %s437, 4
          %s450 = int_to_ptr.vmem [resolvable:$true] %s449
          %452 = dma.hbm_to_vmem [thread:$0]  %s447, 128, %s450, %s434
        $region56: #{tpu_custom_call.1} parent=43 // pred_fallthru
          _
      $region44: #{tpu_custom_call.1} parent=5 // pred_fallthru
        _
      %p453 = scmp.le.s32.totalorder 1, %s28
      %p454 = scmp.lt.s32.totalorder %s28, 5
      %p455 = pnand %p453, %p454
      %p456 = pneg %p455
      // Predicated region
      $region57: #{tpu_custom_call.1} parent=5 // pred_check
        _
      $region58: #{tpu_custom_call.1} parent=5 // pred_check_branch
        %458 = sbr.rel (%p455) target = $region60
      $region59: #{tpu_custom_call.1} parent=5 // pred_region
        %s459 = ssub.s32 %s28, 1
        // Predicated region
        $region61: #{tpu_custom_call.1} parent=59 // pred_check
          %p460 = pneg %p61
        $region62: #{tpu_custom_call.1} parent=59 // pred_check_branch
          %462 = sbr.rel (%p460) target = $region64
        $region63: #{tpu_custom_call.1} parent=59 // pred_region
          %463 = dma.done [#allocation7], 16
        $region64: #{tpu_custom_call.1} parent=59 // pred_fallthru
          _
        %s464 = sand.u32 %s76, 1
        %s465 = scalar_lea.sflag [#allocation5], %s464
        %s466 = sand.u32 %s76, 1
        %s467 = smul.addr %s466, 8
        %s468 = scalar_lea.vmem [#allocation8], %s467
        // Predicated region
        $region65: #{tpu_custom_call.1} parent=59 // pred_check
          %p469 = pneg %p89
        $region66: #{tpu_custom_call.1} parent=59 // pred_check_branch
          %471 = sbr.rel (%p469) target = $region68
        $region67: #{tpu_custom_call.1} parent=59 // pred_region
          %472 = dma.done %s465, 128
        $region68: #{tpu_custom_call.1} parent=59 // pred_fallthru
          _
        %s473 = sand.u32 %s33, 1
        %s474 = scalar_lea.sflag [#allocation10], %s473
        %s475 = sand.u32 %s110, 1
        %s476 = smul.addr %s475, 8
        %s477 = scalar_lea.vmem [#allocation9], %s476
        // Predicated region
        $region69: #{tpu_custom_call.1} parent=59 // pred_check
          %p478 = pneg %p123
        $region70: #{tpu_custom_call.1} parent=59 // pred_check_branch
          %480 = sbr.rel (%p478) target = $region72
        $region71: #{tpu_custom_call.1} parent=59 // pred_region
          %481 = dma.done %s474, 128
        $region72: #{tpu_custom_call.1} parent=59 // pred_fallthru
          _
        %s482 = sand.u32 %s33, 1
        %s483 = scalar_lea.sflag [#allocation10], %s482
        %s484 = sand.u32 %s144, 1
        %s485 = smul.addr %s484, 8
        %s486 = scalar_lea.vmem [#allocation11], %s485
        // Predicated region
        $region73: #{tpu_custom_call.1} parent=59 // pred_check
          %p487 = pneg %p157
        $region74: #{tpu_custom_call.1} parent=59 // pred_check_branch
          %489 = sbr.rel (%p487) target = $region76
        $region75: #{tpu_custom_call.1} parent=59 // pred_region
          %490 = dma.done %s483, 128
        $region76: #{tpu_custom_call.1} parent=59 // pred_fallthru
          _
        // Predicated region
        $region77: #{tpu_custom_call.1} parent=59 // pred_check
          %p491 = pneg %p178
        $region78: #{tpu_custom_call.1} parent=59 // pred_check_branch
          %493 = sbr.rel (%p491) target = $region80
        $region79: #{tpu_custom_call.1} parent=59 // pred_region
          %494 = dma.done [#allocation13], 3072
        $region80: #{tpu_custom_call.1} parent=59 // pred_fallthru
          _
        // Predicated region
        $region81: #{tpu_custom_call.1} parent=59 // pred_check
          %p495 = pneg %p220
        $region82: #{tpu_custom_call.1} parent=59 // pred_check_branch
          %497 = sbr.rel (%p495) target = $region84
        $region83: #{tpu_custom_call.1} parent=59 // pred_region
          %498 = dma.done [#allocation13], 6144
        $region84: #{tpu_custom_call.1} parent=59 // pred_fallthru
          _
        // Predicated region
        $region85: #{tpu_custom_call.1} parent=59 // pred_check
          %p499 = pneg %p262
        $region86: #{tpu_custom_call.1} parent=59 // pred_check_branch
          %501 = sbr.rel (%p499) target = $region88
        $region87: #{tpu_custom_call.1} parent=59 // pred_region
          %502 = dma.done [#allocation16], 3072
        $region88: #{tpu_custom_call.1} parent=59 // pred_fallthru
          _
        %503 = sfence
        %p504 = pneg %p61
        %p505 = pneg %p58
        %s506 = sand.u32 %s76, 1
        %s507 = scalar_lea.sflag [#allocation5], %s506
        %s508 = sand.u32 %s76, 1
        %s509 = smul.addr %s508, 8
        %s510 = scalar_lea.vmem [#allocation8], %s509
        %p511 = pneg %p89
        %p512 = pneg %p86
        %s513 = sand.u32 %s33, 1
        %s514 = scalar_lea.sflag [#allocation10], %s513
        %s515 = sand.u32 %s110, 1
        %s516 = smul.addr %s515, 8
        %s517 = scalar_lea.vmem [#allocation9], %s516
        %p518 = pneg %p123
        %p519 = pneg %p120
        %s520 = sand.u32 %s33, 1
        %s521 = scalar_lea.sflag [#allocation10], %s520
        %s522 = sand.u32 %s144, 1
        %s523 = smul.addr %s522, 8
        %s524 = scalar_lea.vmem [#allocation11], %s523
        %p525 = pneg %p157
        %p526 = pneg %p154
        %p527 = pneg %p178
        %p528 = pneg %p175
        %p529 = pneg %p199
        %p530 = pneg %p196
        %p531 = pneg %p220
        %p532 = pneg %p217
        %p533 = pneg %p241
        %p534 = pneg %p238
        %p535 = pneg %p262
        %p536 = pneg %p259
        %p537 = pneg %p283
        %p538 = pneg %p280
        %p539 = pneg %p311
        %p540 = pneg %p308
        %s541 = sand.u32 %s298, 1
        %s542 = scalar_lea.sflag [#allocation6], %s541
        %s543 = sand.u32 %s298, 1
        %s544 = smul.addr %s543, 8
        %s545 = scalar_lea.vmem [#allocation17], %s544
        %s546 = ssub.s32 %s38, 1
        %p547 = scmp.gt.s32.totalorder %s546, 0
        %s548 = scalar_select %p547, %s546, 0
        %s549 = sadd.s32 %s38, 1
        %p550 = scmp.lt.s32.totalorder %s549, 1
        %s551 = scalar_select %p550, %s549, 1
        %s552 = sld [smem:[#allocation4]]
        %s553 = sld [smem:[#allocation4 + $0x1]]
        %v554 = vld [vmem:[%s468] sm:$0xff]
        %vm555 = vcmask 523264
        %556 = vst.msk [vmem:[#allocation2 + $0x2] sm:$0xff] %vm555, %v554
        %p557 = scmp.gt.s32.totalorder %s38, 0
        // Predicated region
        $region89: #{tpu_custom_call.1} parent=59 // pred_check
          %p558 = pneg %p557
        $region90: #{tpu_custom_call.1} parent=59 // pred_check_branch
          %560 = sbr.rel (%p558) target = $region92
        $region91: #{tpu_custom_call.1} parent=59 // pred_region
          %v561 = vld [vmem:[%s477 + $0x6] sm:$0x3]
          %vm562 = vcmask 517120
          %563 = vst.msk [vmem:[#allocation2] sm:$0x3] %vm562, %v561
        $region92: #{tpu_custom_call.1} parent=59 // pred_fallthru
          _
        %p564 = scmp.eq.s32.totalorder %s38, 0
        // Predicated region
        $region93: #{tpu_custom_call.1} parent=59 // pred_check
          %p565 = pneg %p564
        $region94: #{tpu_custom_call.1} parent=59 // pred_check_branch
          %567 = sbr.rel (%p565) target = $region96
        $region95: #{tpu_custom_call.1} parent=59 // pred_region
          %vm568 = vcmask 517120
          %569 = vst.msk [vmem:[#allocation2] sm:$0x3] %vm568, 0.0
        $region96: #{tpu_custom_call.1} parent=59 // pred_fallthru
          _
        %p570 = scmp.lt.s32.totalorder %s38, 1
        // Predicated region
        $region97: #{tpu_custom_call.1} parent=59 // pred_check
          %p571 = pneg %p570
        $region98: #{tpu_custom_call.1} parent=59 // pred_check_branch
          %573 = sbr.rel (%p571) target = $region100
        $region99: #{tpu_custom_call.1} parent=59 // pred_region
          %v574 = vld [vmem:[%s486] sm:$0x3]
          %vm575 = vcmask 517120
          %576 = vst.msk [vmem:[#allocation2 + $0xa] sm:$0x3] %vm575, %v574
        $region100: #{tpu_custom_call.1} parent=59 // pred_fallthru
          _
        %p577 = scmp.eq.s32.totalorder %s38, 1
        // Predicated region
        $region101: #{tpu_custom_call.1} parent=59 // pred_check
          %p578 = pneg %p577
        $region102: #{tpu_custom_call.1} parent=59 // pred_check_branch
          %580 = sbr.rel (%p578) target = $region104
        $region103: #{tpu_custom_call.1} parent=59 // pred_region
          %vm581 = vcmask 517120
          %582 = vst.msk [vmem:[#allocation2 + $0xa] sm:$0x3] %vm581, 0.0
        $region104: #{tpu_custom_call.1} parent=59 // pred_fallthru
          _
        %v583 = vld [vmem:[#allocation2 + $0x1] sm:$0xff]
        %v584 = vld [vmem:[#allocation15] sm:$0xff]
        %v585 = vld [vmem:[#allocation15 + $0x8] sm:$0xff]
        %v586 = vld [vmem:[#allocation15 + $0x10] sm:$0xff]
        %v587 = vld [vmem:[#allocation15 + $0x18] sm:$0xff]
        %v588 = vld [vmem:[#allocation15 + $0x20] sm:$0xff]
        %v589 = vld [vmem:[#allocation15 + $0x28] sm:$0xff]
        %v590 = vld [vmem:[#allocation15 + $0x30] sm:$0xff]
        %v591 = vld [vmem:[#allocation15 + $0x38] sm:$0xff]
        %v592 = vld [vmem:[#allocation2 + $0x2] sm:$0xff]
        %s593 = scalar_lea.vmem [#allocation15], 64
        %v594 = vld [vmem:[%s593] sm:$0xff]
        %v595 = vld [vmem:[%s593 + $0x8] sm:$0xff]
        %v596 = vld [vmem:[%s593 + $0x10] sm:$0xff]
        %v597 = vld [vmem:[%s593 + $0x18] sm:$0xff]
        %v598 = vld [vmem:[%s593 + $0x20] sm:$0xff]
        %v599 = vld [vmem:[%s593 + $0x28] sm:$0xff]
        %v600 = vld [vmem:[%s593 + $0x30] sm:$0xff]
        %v601 = vld [vmem:[%s593 + $0x38] sm:$0xff]
        %v603 = vsel %vm555, %v592, 0
        %605 = vmatprep.subr.mxu0 0.0
        %606 = vmatpush1.msra.mxu0 %v594
        %607 = vmatprep.subr.mxu0 0.0
        %608 = vmatpush1.msra.mxu0 %v595
        %609 = vmatprep.subr.mxu0 0.0
        %610 = vmatpush1.msra.mxu0 %v596
        %611 = vmatprep.subr.mxu0 0.0
        %612 = vmatpush1.msra.mxu0 %v597
        %613 = vmatprep.subr.mxu0 0.0
        %614 = vmatpush1.msra.mxu0 %v598
        %615 = vmatprep.subr.mxu0 0.0
        %616 = vmatpush1.msra.mxu0 %v599
        %617 = vmatprep.subr.mxu0 0.0
        %618 = vmatpush1.msra.mxu0 %v600
        %619 = vmatprep.subr.mxu0 0.0
        %620 = vmatpush1.msra.mxu0 %v601
        %621 = vmatprep.subr.mxu0 0.0
        %622 = vmatpush1.msra.mxu0 0.0
        %623 = vmatprep.subr.mxu0 0.0
        %624 = vmatpush1.msra.mxu0 0.0
        %625 = vmatprep.subr.mxu0 0.0
        %626 = vmatpush1.msra.mxu0 0.0
        %627 = vmatprep.subr.mxu0 0.0
        %628 = vmatpush1.msra.mxu0 0.0
        %629 = vmatprep.subr.mxu0 0.0
        %630 = vmatpush1.msra.mxu0 0.0
        %631 = vmatprep.subr.mxu0 0.0
        %632 = vmatpush1.msra.mxu0 0.0
        %633 = vmatprep.subr.mxu0 0.0
        %634 = vmatpush1.msra.mxu0 0.0
        %635 = vmatprep.subr.mxu0 0.0
        %636 = vmatpush1.msra.mxu0 0.0
        %637 = vmatprep.subr.mxu0 0.0
        %638 = vmatpush1.msra.mxu0 0.0
        %639 = vmatprep.subr.mxu0 0.0
        %640 = vmatpush1.msra.mxu0 0.0
        %641 = vmatprep.subr.mxu0 0.0
        %642 = vmatpush1.msra.mxu0 0.0
        %643 = vmatprep.subr.mxu0 0.0
        %644 = vmatpush1.msra.mxu0 0.0
        %645 = vmatprep.subr.mxu0 0.0
        %646 = vmatpush1.msra.mxu0 0.0
        %647 = vmatprep.subr.mxu0 0.0
        %648 = vmatpush1.msra.mxu0 0.0
        %649 = vmatprep.subr.mxu0 0.0
        %650 = vmatpush1.msra.mxu0 0.0
        %651 = vmatprep.subr.mxu0 0.0
        %652 = vmatpush1.msra.mxu0 0.0
        %653 = vmatprep.subr.mxu0 0.0
        %654 = vmatpush1.msra.mxu0 0.0
        %655 = vmatprep.subr.mxu0 0.0
        %656 = vmatpush1.msra.mxu0 0.0
        %657 = vmatprep.subr.mxu0 0.0
        %658 = vmatpush1.msra.mxu0 0.0
        %659 = vmatprep.subr.mxu0 0.0
        %660 = vmatpush1.msra.mxu0 0.0
        %661 = vmatprep.subr.mxu0 0.0
        %662 = vmatpush1.msra.mxu0 0.0
        %663 = vmatprep.subr.mxu0 0.0
        %664 = vmatpush1.msra.mxu0 0.0
        %665 = vmatprep.subr.mxu0 0.0
        %666 = vmatpush1.msra.mxu0 0.0
        %667 = vmatprep.subr.mxu0 0.0
        %668 = vmatpush1.msra.mxu0 0.0
        %669 = vmatprep.mubr.f32.mxu0 0.0
        %670 = vmatmul.mubr.f32.gmra.mrb[0].mxu0 %v603
        %v671 = vpop.f32.mrb[0].mxu0
        %v672 = vadd.f32 0.0, %v671
        %v673 = vpop.f32.mrb[0].mxu0
        %674 = vdwg.mxu0
        %v676 = vsel %vm555, %v583, 0
        %678 = vmatprep.subr.mxu0 0.0
        %679 = vmatpush1.msra.mxu0 %v584
        %680 = vmatprep.subr.mxu0 0.0
        %681 = vmatpush1.msra.mxu0 %v585
        %682 = vmatprep.subr.mxu0 0.0
        %683 = vmatpush1.msra.mxu0 %v586
        %684 = vmatprep.subr.mxu0 0.0
        %685 = vmatpush1.msra.mxu0 %v587
        %686 = vmatprep.subr.mxu0 0.0
        %687 = vmatpush1.msra.mxu0 %v588
        %688 = vmatprep.subr.mxu0 0.0
        %689 = vmatpush1.msra.mxu0 %v589
        %690 = vmatprep.subr.mxu0 0.0
        %691 = vmatpush1.msra.mxu0 %v590
        %692 = vmatprep.subr.mxu0 0.0
        %693 = vmatpush1.msra.mxu0 %v591
        %694 = vmatprep.subr.mxu0 0.0
        %695 = vmatpush1.msra.mxu0 0.0
        %696 = vmatprep.subr.mxu0 0.0
        %697 = vmatpush1.msra.mxu0 0.0
        %698 = vmatprep.subr.mxu0 0.0
        %699 = vmatpush1.msra.mxu0 0.0
        %700 = vmatprep.subr.mxu0 0.0
        %701 = vmatpush1.msra.mxu0 0.0
        %702 = vmatprep.subr.mxu0 0.0
        %703 = vmatpush1.msra.mxu0 0.0
        %704 = vmatprep.subr.mxu0 0.0
        %705 = vmatpush1.msra.mxu0 0.0
        %706 = vmatprep.subr.mxu0 0.0
        %707 = vmatpush1.msra.mxu0 0.0
        %708 = vmatprep.subr.mxu0 0.0
        %709 = vmatpush1.msra.mxu0 0.0
        %710 = vmatprep.subr.mxu0 0.0
        %711 = vmatpush1.msra.mxu0 0.0
        %712 = vmatprep.subr.mxu0 0.0
        %713 = vmatpush1.msra.mxu0 0.0
        %714 = vmatprep.subr.mxu0 0.0
        %715 = vmatpush1.msra.mxu0 0.0
        %716 = vmatprep.subr.mxu0 0.0
        %717 = vmatpush1.msra.mxu0 0.0
        %718 = vmatprep.subr.mxu0 0.0
        %719 = vmatpush1.msra.mxu0 0.0
        %720 = vmatprep.subr.mxu0 0.0
        %721 = vmatpush1.msra.mxu0 0.0
        %722 = vmatprep.subr.mxu0 0.0
        %723 = vmatpush1.msra.mxu0 0.0
        %724 = vmatprep.subr.mxu0 0.0
        %725 = vmatpush1.msra.mxu0 0.0
        %726 = vmatprep.subr.mxu0 0.0
        %727 = vmatpush1.msra.mxu0 0.0
        %728 = vmatprep.subr.mxu0 0.0
        %729 = vmatpush1.msra.mxu0 0.0
        %730 = vmatprep.subr.mxu0 0.0
        %731 = vmatpush1.msra.mxu0 0.0
        %732 = vmatprep.subr.mxu0 0.0
        %733 = vmatpush1.msra.mxu0 0.0
        %734 = vmatprep.subr.mxu0 0.0
        %735 = vmatpush1.msra.mxu0 0.0
        %736 = vmatprep.subr.mxu0 0.0
        %737 = vmatpush1.msra.mxu0 0.0
        %738 = vmatprep.subr.mxu0 0.0
        %739 = vmatpush1.msra.mxu0 0.0
        %740 = vmatprep.subr.mxu0 0.0
        %741 = vmatpush1.msra.mxu0 0.0
        %742 = vmatprep.mubr.f32.mxu0 0.0
        %743 = vmatmul.mubr.f32.gmra.mrb[0].mxu0 %v676
        %v744 = vpop.f32.mrb[0].mxu0
        %v745 = vadd.f32 %v672, %v744
        %v746 = vpop.f32.mrb[0].mxu0
        %747 = vdwg.mxu0
        %v748 = vld [vmem:[#allocation2 + $0x3] sm:$0xff]
        %s749 = scalar_lea.vmem [#allocation15], 128
        %v750 = vld [vmem:[%s749] sm:$0xff]
        %v751 = vld [vmem:[%s749 + $0x8] sm:$0xff]
        %v752 = vld [vmem:[%s749 + $0x10] sm:$0xff]
        %v753 = vld [vmem:[%s749 + $0x18] sm:$0xff]
        %v754 = vld [vmem:[%s749 + $0x20] sm:$0xff]
        %v755 = vld [vmem:[%s749 + $0x28] sm:$0xff]
        %v756 = vld [vmem:[%s749 + $0x30] sm:$0xff]
        %v757 = vld [vmem:[%s749 + $0x38] sm:$0xff]
        %v759 = vsel %vm555, %v748, 0
        %761 = vmatprep.subr.mxu0 0.0
        %762 = vmatpush1.msra.mxu0 %v750
        %763 = vmatprep.subr.mxu0 0.0
        %764 = vmatpush1.msra.mxu0 %v751
        %765 = vmatprep.subr.mxu0 0.0
        %766 = vmatpush1.msra.mxu0 %v752
        %767 = vmatprep.subr.mxu0 0.0
        %768 = vmatpush1.msra.mxu0 %v753
        %769 = vmatprep.subr.mxu0 0.0
        %770 = vmatpush1.msra.mxu0 %v754
        %771 = vmatprep.subr.mxu0 0.0
        %772 = vmatpush1.msra.mxu0 %v755
        %773 = vmatprep.subr.mxu0 0.0
        %774 = vmatpush1.msra.mxu0 %v756
        %775 = vmatprep.subr.mxu0 0.0
        %776 = vmatpush1.msra.mxu0 %v757
        %777 = vmatprep.subr.mxu0 0.0
        %778 = vmatpush1.msra.mxu0 0.0
        %779 = vmatprep.subr.mxu0 0.0
        %780 = vmatpush1.msra.mxu0 0.0
        %781 = vmatprep.subr.mxu0 0.0
        %782 = vmatpush1.msra.mxu0 0.0
        %783 = vmatprep.subr.mxu0 0.0
        %784 = vmatpush1.msra.mxu0 0.0
        %785 = vmatprep.subr.mxu0 0.0
        %786 = vmatpush1.msra.mxu0 0.0
        %787 = vmatprep.subr.mxu0 0.0
        %788 = vmatpush1.msra.mxu0 0.0
        %789 = vmatprep.subr.mxu0 0.0
        %790 = vmatpush1.msra.mxu0 0.0
        %791 = vmatprep.subr.mxu0 0.0
        %792 = vmatpush1.msra.mxu0 0.0
        %793 = vmatprep.subr.mxu0 0.0
        %794 = vmatpush1.msra.mxu0 0.0
        %795 = vmatprep.subr.mxu0 0.0
        %796 = vmatpush1.msra.mxu0 0.0
        %797 = vmatprep.subr.mxu0 0.0
        %798 = vmatpush1.msra.mxu0 0.0
        %799 = vmatprep.subr.mxu0 0.0
        %800 = vmatpush1.msra.mxu0 0.0
        %801 = vmatprep.subr.mxu0 0.0
        %802 = vmatpush1.msra.mxu0 0.0
        %803 = vmatprep.subr.mxu0 0.0
        %804 = vmatpush1.msra.mxu0 0.0
        %805 = vmatprep.subr.mxu0 0.0
        %806 = vmatpush1.msra.mxu0 0.0
        %807 = vmatprep.subr.mxu0 0.0
        %808 = vmatpush1.msra.mxu0 0.0
        %809 = vmatprep.subr.mxu0 0.0
        %810 = vmatpush1.msra.mxu0 0.0
        %811 = vmatprep.subr.mxu0 0.0
        %812 = vmatpush1.msra.mxu0 0.0
        %813 = vmatprep.subr.mxu0 0.0
        %814 = vmatpush1.msra.mxu0 0.0
        %815 = vmatprep.subr.mxu0 0.0
        %816 = vmatpush1.msra.mxu0 0.0
        %817 = vmatprep.subr.mxu0 0.0
        %818 = vmatpush1.msra.mxu0 0.0
        %819 = vmatprep.subr.mxu0 0.0
        %820 = vmatpush1.msra.mxu0 0.0
        %821 = vmatprep.subr.mxu0 0.0
        %822 = vmatpush1.msra.mxu0 0.0
        %823 = vmatprep.subr.mxu0 0.0
        %824 = vmatpush1.msra.mxu0 0.0
        %825 = vmatprep.mubr.f32.mxu0 0.0
        %826 = vmatmul.mubr.f32.gmra.mrb[0].mxu0 %v759
        %v827 = vpop.f32.mrb[0].mxu0
        %v828 = vadd.f32 0.0, %v827
        %v829 = vpop.f32.mrb[0].mxu0
        %830 = vdwg.mxu0
        %v831 = vadd.f32 %v745, %v828
        %v832 = vld [vmem:[%s9] sm:$0x1]
        %v834 = vlaneseq
        %v835 = vshrl.u32 %v834, 7
        %v836 = vsub.s32 0, %v835
        %v837 = vrot.slane %v832, %v836
        %v839 = vadd.f32 %v831, %v837
        %v840 = vld [vmem:[#allocation2] sm:$0xff]
        %v841 = vld [vmem:[#allocation2 + $0x8] sm:$0xf]
        %v842 = vmax.f32 %v840, 0.0
        %v843 = vmax.f32 %v841, 0.0
        %v844 = vmin.f32 %v840, 0.0
        %v845 = vmin.f32 %v841, 0.0
        %v846 = vstv %s552
        %v847 = vmul.f32 %v846, %v844
        %v848 = vmul.f32 %v846, %v845
        %v849 = vadd.f32 %v842, %v847
        %v850 = vadd.f32 %v843, %v848
        %851 = vst.msk [vmem:[#allocation2] sm:$0xff] %vm555, %v849
        %vm852 = vcmask 519168
        %853 = vst.msk [vmem:[#allocation2 + $0x8] sm:$0xf] %vm852, %v850
        %v854 = vld [vmem:[#allocation2] sm:$0xff]
        %v855 = vld [vmem:[#allocation2 + $0x8] sm:$0x3]
        %v856 = vld [vmem:[#allocation12] sm:$0xff]
        %v857 = vld [vmem:[#allocation12 + $0x8] sm:$0xff]
        %v858 = vld [vmem:[#allocation12 + $0x10] sm:$0xff]
        %v859 = vld [vmem:[#allocation12 + $0x18] sm:$0xff]
        %v860 = vld [vmem:[#allocation12 + $0x20] sm:$0xff]
        %v861 = vld [vmem:[#allocation12 + $0x28] sm:$0xff]
        %v862 = vld [vmem:[#allocation12 + $0x30] sm:$0xff]
        %v863 = vld [vmem:[#allocation12 + $0x38] sm:$0xff]
        %v864 = vld [vmem:[#allocation2 + $0x1] sm:$0xff]
        %v865 = vld [vmem:[#allocation2 + $0x9] sm:$0x3]
        %s866 = scalar_lea.vmem [#allocation12], 64
        %v867 = vld [vmem:[%s866] sm:$0xff]
        %v868 = vld [vmem:[%s866 + $0x8] sm:$0xff]
        %v869 = vld [vmem:[%s866 + $0x10] sm:$0xff]
        %v870 = vld [vmem:[%s866 + $0x18] sm:$0xff]
        %v871 = vld [vmem:[%s866 + $0x20] sm:$0xff]
        %v872 = vld [vmem:[%s866 + $0x28] sm:$0xff]
        %v873 = vld [vmem:[%s866 + $0x30] sm:$0xff]
        %v874 = vld [vmem:[%s866 + $0x38] sm:$0xff]
        %v876 = vsel %vm555, %v864, 0
        %v879 = vsel %vm555, %v865, 0
        %881 = vmatprep.subr.mxu0 0.0
        %882 = vmatpush1.msra.mxu0 %v867
        %883 = vmatprep.subr.mxu0 0.0
        %884 = vmatpush1.msra.mxu0 %v868
        %885 = vmatprep.subr.mxu0 0.0
        %886 = vmatpush1.msra.mxu0 %v869
        %887 = vmatprep.subr.mxu0 0.0
        %888 = vmatpush1.msra.mxu0 %v870
        %889 = vmatprep.subr.mxu0 0.0
        %890 = vmatpush1.msra.mxu0 %v871
        %891 = vmatprep.subr.mxu0 0.0
        %892 = vmatpush1.msra.mxu0 %v872
        %893 = vmatprep.subr.mxu0 0.0
        %894 = vmatpush1.msra.mxu0 %v873
        %895 = vmatprep.subr.mxu0 0.0
        %896 = vmatpush1.msra.mxu0 %v874
        %897 = vmatprep.subr.mxu0 0.0
        %898 = vmatpush1.msra.mxu0 0.0
        %899 = vmatprep.subr.mxu0 0.0
        %900 = vmatpush1.msra.mxu0 0.0
        %901 = vmatprep.subr.mxu0 0.0
        %902 = vmatpush1.msra.mxu0 0.0
        %903 = vmatprep.subr.mxu0 0.0
        %904 = vmatpush1.msra.mxu0 0.0
        %905 = vmatprep.subr.mxu0 0.0
        %906 = vmatpush1.msra.mxu0 0.0
        %907 = vmatprep.subr.mxu0 0.0
        %908 = vmatpush1.msra.mxu0 0.0
        %909 = vmatprep.subr.mxu0 0.0
        %910 = vmatpush1.msra.mxu0 0.0
        %911 = vmatprep.subr.mxu0 0.0
        %912 = vmatpush1.msra.mxu0 0.0
        %913 = vmatprep.subr.mxu0 0.0
        %914 = vmatpush1.msra.mxu0 0.0
        %915 = vmatprep.subr.mxu0 0.0
        %916 = vmatpush1.msra.mxu0 0.0
        %917 = vmatprep.subr.mxu0 0.0
        %918 = vmatpush1.msra.mxu0 0.0
        %919 = vmatprep.subr.mxu0 0.0
        %920 = vmatpush1.msra.mxu0 0.0
        %921 = vmatprep.subr.mxu0 0.0
        %922 = vmatpush1.msra.mxu0 0.0
        %923 = vmatprep.subr.mxu0 0.0
        %924 = vmatpush1.msra.mxu0 0.0
        %925 = vmatprep.subr.mxu0 0.0
        %926 = vmatpush1.msra.mxu0 0.0
        %927 = vmatprep.subr.mxu0 0.0
        %928 = vmatpush1.msra.mxu0 0.0
        %929 = vmatprep.subr.mxu0 0.0
        %930 = vmatpush1.msra.mxu0 0.0
        %931 = vmatprep.subr.mxu0 0.0
        %932 = vmatpush1.msra.mxu0 0.0
        %933 = vmatprep.subr.mxu0 0.0
        %934 = vmatpush1.msra.mxu0 0.0
        %935 = vmatprep.subr.mxu0 0.0
        %936 = vmatpush1.msra.mxu0 0.0
        %937 = vmatprep.subr.mxu0 0.0
        %938 = vmatpush1.msra.mxu0 0.0
        %939 = vmatprep.subr.mxu0 0.0
        %940 = vmatpush1.msra.mxu0 0.0
        %941 = vmatprep.subr.mxu0 0.0
        %942 = vmatpush1.msra.mxu0 0.0
        %943 = vmatprep.subr.mxu0 0.0
        %944 = vmatpush1.msra.mxu0 0.0
        %945 = vmatprep.mubr.f32.mxu0 0.0
        %946 = vmatmul.mubr.f32.gmra.mrb[0].mxu0 %v876
        %v947 = vpop.f32.mrb[0].mxu0
        %v948 = vadd.f32 0.0, %v947
        %v949 = vpop.f32.mrb[0].mxu0
        %950 = vmatprep.mubr.f32.mxu0 0.0
        %951 = vmatmul.mubr.f32.gmra.mrb[0].mxu0 %v879
        %v952 = vpop.f32.mrb[0].mxu0
        %v953 = vadd.f32 0.0, %v952
        %v954 = vpop.f32.mrb[0].mxu0
        %955 = vdwg.mxu0
        %v957 = vsel %vm555, %v854, 0
        %v960 = vsel %vm555, %v855, 0
        %962 = vmatprep.subr.mxu0 0.0
        %963 = vmatpush1.msra.mxu0 %v856
        %964 = vmatprep.subr.mxu0 0.0
        %965 = vmatpush1.msra.mxu0 %v857
        %966 = vmatprep.subr.mxu0 0.0
        %967 = vmatpush1.msra.mxu0 %v858
        %968 = vmatprep.subr.mxu0 0.0
        %969 = vmatpush1.msra.mxu0 %v859
        %970 = vmatprep.subr.mxu0 0.0
        %971 = vmatpush1.msra.mxu0 %v860
        %972 = vmatprep.subr.mxu0 0.0
        %973 = vmatpush1.msra.mxu0 %v861
        %974 = vmatprep.subr.mxu0 0.0
        %975 = vmatpush1.msra.mxu0 %v862
        %976 = vmatprep.subr.mxu0 0.0
        %977 = vmatpush1.msra.mxu0 %v863
        %978 = vmatprep.subr.mxu0 0.0
        %979 = vmatpush1.msra.mxu0 0.0
        %980 = vmatprep.subr.mxu0 0.0
        %981 = vmatpush1.msra.mxu0 0.0
        %982 = vmatprep.subr.mxu0 0.0
        %983 = vmatpush1.msra.mxu0 0.0
        %984 = vmatprep.subr.mxu0 0.0
        %985 = vmatpush1.msra.mxu0 0.0
        %986 = vmatprep.subr.mxu0 0.0
        %987 = vmatpush1.msra.mxu0 0.0
        %988 = vmatprep.subr.mxu0 0.0
        %989 = vmatpush1.msra.mxu0 0.0
        %990 = vmatprep.subr.mxu0 0.0
        %991 = vmatpush1.msra.mxu0 0.0
        %992 = vmatprep.subr.mxu0 0.0
        %993 = vmatpush1.msra.mxu0 0.0
        %994 = vmatprep.subr.mxu0 0.0
        %995 = vmatpush1.msra.mxu0 0.0
        %996 = vmatprep.subr.mxu0 0.0
        %997 = vmatpush1.msra.mxu0 0.0
        %998 = vmatprep.subr.mxu0 0.0
        %999 = vmatpush1.msra.mxu0 0.0
        %1000 = vmatprep.subr.mxu0 0.0
        %1001 = vmatpush1.msra.mxu0 0.0
        %1002 = vmatprep.subr.mxu0 0.0
        %1003 = vmatpush1.msra.mxu0 0.0
        %1004 = vmatprep.subr.mxu0 0.0
        %1005 = vmatpush1.msra.mxu0 0.0
        %1006 = vmatprep.subr.mxu0 0.0
        %1007 = vmatpush1.msra.mxu0 0.0
        %1008 = vmatprep.subr.mxu0 0.0
        %1009 = vmatpush1.msra.mxu0 0.0
        %1010 = vmatprep.subr.mxu0 0.0
        %1011 = vmatpush1.msra.mxu0 0.0
        %1012 = vmatprep.subr.mxu0 0.0
        %1013 = vmatpush1.msra.mxu0 0.0
        %1014 = vmatprep.subr.mxu0 0.0
        %1015 = vmatpush1.msra.mxu0 0.0
        %1016 = vmatprep.subr.mxu0 0.0
        %1017 = vmatpush1.msra.mxu0 0.0
        %1018 = vmatprep.subr.mxu0 0.0
        %1019 = vmatpush1.msra.mxu0 0.0
        %1020 = vmatprep.subr.mxu0 0.0
        %1021 = vmatpush1.msra.mxu0 0.0
        %1022 = vmatprep.subr.mxu0 0.0
        %1023 = vmatpush1.msra.mxu0 0.0
        %1024 = vmatprep.subr.mxu0 0.0
        %1025 = vmatpush1.msra.mxu0 0.0
        %1026 = vmatprep.mubr.f32.mxu0 0.0
        %1027 = vmatmul.mubr.f32.gmra.mrb[0].mxu0 %v957
        %v1028 = vpop.f32.mrb[0].mxu0
        %v1029 = vadd.f32 %v948, %v1028
        %v1030 = vpop.f32.mrb[0].mxu0
        %1031 = vmatprep.mubr.f32.mxu0 0.0
        %1032 = vmatmul.mubr.f32.gmra.mrb[0].mxu0 %v960
        %v1033 = vpop.f32.mrb[0].mxu0
        %v1034 = vadd.f32 %v953, %v1033
        %v1035 = vpop.f32.mrb[0].mxu0
        %1036 = vdwg.mxu0
        %v1037 = vld [vmem:[#allocation2 + $0x2] sm:$0xff]
        %v1038 = vld [vmem:[#allocation2 + $0xa] sm:$0x3]
        %s1039 = scalar_lea.vmem [#allocation12], 128
        %v1040 = vld [vmem:[%s1039] sm:$0xff]
        %v1041 = vld [vmem:[%s1039 + $0x8] sm:$0xff]
        %v1042 = vld [vmem:[%s1039 + $0x10] sm:$0xff]
        %v1043 = vld [vmem:[%s1039 + $0x18] sm:$0xff]
        %v1044 = vld [vmem:[%s1039 + $0x20] sm:$0xff]
        %v1045 = vld [vmem:[%s1039 + $0x28] sm:$0xff]
        %v1046 = vld [vmem:[%s1039 + $0x30] sm:$0xff]
        %v1047 = vld [vmem:[%s1039 + $0x38] sm:$0xff]
        %v1049 = vsel %vm555, %v1037, 0
        %v1052 = vsel %vm555, %v1038, 0
        %1054 = vmatprep.subr.mxu0 0.0
        %1055 = vmatpush1.msra.mxu0 %v1040
        %1056 = vmatprep.subr.mxu0 0.0
        %1057 = vmatpush1.msra.mxu0 %v1041
        %1058 = vmatprep.subr.mxu0 0.0
        %1059 = vmatpush1.msra.mxu0 %v1042
        %1060 = vmatprep.subr.mxu0 0.0
        %1061 = vmatpush1.msra.mxu0 %v1043
        %1062 = vmatprep.subr.mxu0 0.0
        %1063 = vmatpush1.msra.mxu0 %v1044
        %1064 = vmatprep.subr.mxu0 0.0
        %1065 = vmatpush1.msra.mxu0 %v1045
        %1066 = vmatprep.subr.mxu0 0.0
        %1067 = vmatpush1.msra.mxu0 %v1046
        %1068 = vmatprep.subr.mxu0 0.0
        %1069 = vmatpush1.msra.mxu0 %v1047
        %1070 = vmatprep.subr.mxu0 0.0
        %1071 = vmatpush1.msra.mxu0 0.0
        %1072 = vmatprep.subr.mxu0 0.0
        %1073 = vmatpush1.msra.mxu0 0.0
        %1074 = vmatprep.subr.mxu0 0.0
        %1075 = vmatpush1.msra.mxu0 0.0
        %1076 = vmatprep.subr.mxu0 0.0
        %1077 = vmatpush1.msra.mxu0 0.0
        %1078 = vmatprep.subr.mxu0 0.0
        %1079 = vmatpush1.msra.mxu0 0.0
        %1080 = vmatprep.subr.mxu0 0.0
        %1081 = vmatpush1.msra.mxu0 0.0
        %1082 = vmatprep.subr.mxu0 0.0
        %1083 = vmatpush1.msra.mxu0 0.0
        %1084 = vmatprep.subr.mxu0 0.0
        %1085 = vmatpush1.msra.mxu0 0.0
        %1086 = vmatprep.subr.mxu0 0.0
        %1087 = vmatpush1.msra.mxu0 0.0
        %1088 = vmatprep.subr.mxu0 0.0
        %1089 = vmatpush1.msra.mxu0 0.0
        %1090 = vmatprep.subr.mxu0 0.0
        %1091 = vmatpush1.msra.mxu0 0.0
        %1092 = vmatprep.subr.mxu0 0.0
        %1093 = vmatpush1.msra.mxu0 0.0
        %1094 = vmatprep.subr.mxu0 0.0
        %1095 = vmatpush1.msra.mxu0 0.0
        %1096 = vmatprep.subr.mxu0 0.0
        %1097 = vmatpush1.msra.mxu0 0.0
        %1098 = vmatprep.subr.mxu0 0.0
        %1099 = vmatpush1.msra.mxu0 0.0
        %1100 = vmatprep.subr.mxu0 0.0
        %1101 = vmatpush1.msra.mxu0 0.0
        %1102 = vmatprep.subr.mxu0 0.0
        %1103 = vmatpush1.msra.mxu0 0.0
        %1104 = vmatprep.subr.mxu0 0.0
        %1105 = vmatpush1.msra.mxu0 0.0
        %1106 = vmatprep.subr.mxu0 0.0
        %1107 = vmatpush1.msra.mxu0 0.0
        %1108 = vmatprep.subr.mxu0 0.0
        %1109 = vmatpush1.msra.mxu0 0.0
        %1110 = vmatprep.subr.mxu0 0.0
        %1111 = vmatpush1.msra.mxu0 0.0
        %1112 = vmatprep.subr.mxu0 0.0
        %1113 = vmatpush1.msra.mxu0 0.0
        %1114 = vmatprep.subr.mxu0 0.0
        %1115 = vmatpush1.msra.mxu0 0.0
        %1116 = vmatprep.subr.mxu0 0.0
        %1117 = vmatpush1.msra.mxu0 0.0
        %1118 = vmatprep.mubr.f32.mxu0 0.0
        %1119 = vmatmul.mubr.f32.gmra.mrb[0].mxu0 %v1049
        %v1120 = vpop.f32.mrb[0].mxu0
        %v1121 = vadd.f32 0.0, %v1120
        %v1122 = vpop.f32.mrb[0].mxu0
        %1123 = vmatprep.mubr.f32.mxu0 0.0
        %1124 = vmatmul.mubr.f32.gmra.mrb[0].mxu0 %v1052
        %v1125 = vpop.f32.mrb[0].mxu0
        %v1126 = vadd.f32 0.0, %v1125
        %v1127 = vpop.f32.mrb[0].mxu0
        %1128 = vdwg.mxu0
        %v1129 = vadd.f32 %v1029, %v1121
        %v1130 = vadd.f32 %v1034, %v1126
        %v1131 = vld [vmem:[%s5] sm:$0x1]
        %v1133 = vlaneseq
        %v1134 = vshrl.u32 %v1133, 7
        %v1135 = vsub.s32 0, %v1134
        %v1136 = vrot.slane %v1131, %v1135
        %v1138 = vadd.f32 %v1129, %v1136
        %v1139 = vadd.f32 %v1130, %v1136
        %v1140 = vmax.f32 %v1138, 0.0
        %v1141 = vmax.f32 %v1139, 0.0
        %v1142 = vmin.f32 %v1138, 0.0
        %v1143 = vmin.f32 %v1139, 0.0
        %v1144 = vstv %s553
        %v1145 = vmul.f32 %v1144, %v1142
        %v1146 = vmul.f32 %v1144, %v1143
        %v1147 = vadd.f32 %v1140, %v1145
        %v1148 = vadd.f32 %v1141, %v1146
        %1149 = vst [vmem:[#allocation3] sm:$0xff] %v1147
        %1150 = vst [vmem:[#allocation3 + $0x8] sm:$0x3] %v1148
        // Predicated region
        $region105: #{tpu_custom_call.1} parent=59 // pred_check
          %p1151 = pneg %p564
        $region106: #{tpu_custom_call.1} parent=59 // pred_check_branch
          %1153 = sbr.rel (%p1151) target = $region108
        $region107: #{tpu_custom_call.1} parent=59 // pred_region
          %1154 = vst [vmem:[#allocation3] sm:$0x1] 0.0
        $region108: #{tpu_custom_call.1} parent=59 // pred_fallthru
          _
        // Predicated region
        $region109: #{tpu_custom_call.1} parent=59 // pred_check
          %p1155 = pneg %p577
        $region110: #{tpu_custom_call.1} parent=59 // pred_check_branch
          %1157 = sbr.rel (%p1155) target = $region112
        $region111: #{tpu_custom_call.1} parent=59 // pred_region
          %1158 = vst [vmem:[#allocation3 + $0x9] sm:$0x1] 0.0
        $region112: #{tpu_custom_call.1} parent=59 // pred_fallthru
          _
        %v1159 = vld [vmem:[#allocation3] sm:$0xff]
        %v1160 = vld [vmem:[#allocation14] sm:$0xff]
        %v1161 = vld [vmem:[#allocation14 + $0x8] sm:$0xff]
        %v1162 = vld [vmem:[#allocation14 + $0x10] sm:$0xff]
        %v1163 = vld [vmem:[#allocation14 + $0x18] sm:$0xff]
        %v1164 = vld [vmem:[#allocation14 + $0x20] sm:$0xff]
        %v1165 = vld [vmem:[#allocation14 + $0x28] sm:$0xff]
        %v1166 = vld [vmem:[#allocation14 + $0x30] sm:$0xff]
        %v1167 = vld [vmem:[#allocation14 + $0x38] sm:$0xff]
        %v1168 = vld [vmem:[#allocation14 + $0x40] sm:$0xff]
        %v1169 = vld [vmem:[#allocation14 + $0x48] sm:$0xff]
        %v1170 = vld [vmem:[#allocation14 + $0x50] sm:$0xff]
        %v1171 = vld [vmem:[#allocation14 + $0x58] sm:$0xff]
        %v1172 = vld [vmem:[#allocation14 + $0x60] sm:$0xff]
        %v1173 = vld [vmem:[#allocation14 + $0x68] sm:$0xff]
        %v1174 = vld [vmem:[#allocation14 + $0x70] sm:$0xff]
        %v1175 = vld [vmem:[#allocation14 + $0x78] sm:$0xff]
        %v1176 = vld [vmem:[#allocation3 + $0x1] sm:$0xff]
        %s1177 = scalar_lea.vmem [#allocation14], 128
        %v1178 = vld [vmem:[%s1177] sm:$0xff]
        %v1179 = vld [vmem:[%s1177 + $0x8] sm:$0xff]
        %v1180 = vld [vmem:[%s1177 + $0x10] sm:$0xff]
        %v1181 = vld [vmem:[%s1177 + $0x18] sm:$0xff]
        %v1182 = vld [vmem:[%s1177 + $0x20] sm:$0xff]
        %v1183 = vld [vmem:[%s1177 + $0x28] sm:$0xff]
        %v1184 = vld [vmem:[%s1177 + $0x30] sm:$0xff]
        %v1185 = vld [vmem:[%s1177 + $0x38] sm:$0xff]
        %v1186 = vld [vmem:[%s1177 + $0x40] sm:$0xff]
        %v1187 = vld [vmem:[%s1177 + $0x48] sm:$0xff]
        %v1188 = vld [vmem:[%s1177 + $0x50] sm:$0xff]
        %v1189 = vld [vmem:[%s1177 + $0x58] sm:$0xff]
        %v1190 = vld [vmem:[%s1177 + $0x60] sm:$0xff]
        %v1191 = vld [vmem:[%s1177 + $0x68] sm:$0xff]
        %v1192 = vld [vmem:[%s1177 + $0x70] sm:$0xff]
        %v1193 = vld [vmem:[%s1177 + $0x78] sm:$0xff]
        %1194 = vmatprep.subr.mxu0 0.0
        %1195 = vmatpush1.msra.mxu0 %v1178
        %1196 = vmatprep.subr.mxu0 0.0
        %1197 = vmatpush1.msra.mxu0 %v1179
        %1198 = vmatprep.subr.mxu0 0.0
        %1199 = vmatpush1.msra.mxu0 %v1180
        %1200 = vmatprep.subr.mxu0 0.0
        %1201 = vmatpush1.msra.mxu0 %v1181
        %1202 = vmatprep.subr.mxu0 0.0
        %1203 = vmatpush1.msra.mxu0 %v1182
        %1204 = vmatprep.subr.mxu0 0.0
        %1205 = vmatpush1.msra.mxu0 %v1183
        %1206 = vmatprep.subr.mxu0 0.0
        %1207 = vmatpush1.msra.mxu0 %v1184
        %1208 = vmatprep.subr.mxu0 0.0
        %1209 = vmatpush1.msra.mxu0 %v1185
        %1210 = vmatprep.subr.mxu0 0.0
        %1211 = vmatpush1.msra.mxu0 %v1186
        %1212 = vmatprep.subr.mxu0 0.0
        %1213 = vmatpush1.msra.mxu0 %v1187
        %1214 = vmatprep.subr.mxu0 0.0
        %1215 = vmatpush1.msra.mxu0 %v1188
        %1216 = vmatprep.subr.mxu0 0.0
        %1217 = vmatpush1.msra.mxu0 %v1189
        %1218 = vmatprep.subr.mxu0 0.0
        %1219 = vmatpush1.msra.mxu0 %v1190
        %1220 = vmatprep.subr.mxu0 0.0
        %1221 = vmatpush1.msra.mxu0 %v1191
        %1222 = vmatprep.subr.mxu0 0.0
        %1223 = vmatpush1.msra.mxu0 %v1192
        %1224 = vmatprep.subr.mxu0 0.0
        %1225 = vmatpush1.msra.mxu0 %v1193
        %1226 = vmatprep.subr.mxu0 0.0
        %1227 = vmatpush1.msra.mxu0 0.0
        %1228 = vmatprep.subr.mxu0 0.0
        %1229 = vmatpush1.msra.mxu0 0.0
        %1230 = vmatprep.subr.mxu0 0.0
        %1231 = vmatpush1.msra.mxu0 0.0
        %1232 = vmatprep.subr.mxu0 0.0
        %1233 = vmatpush1.msra.mxu0 0.0
        %1234 = vmatprep.subr.mxu0 0.0
        %1235 = vmatpush1.msra.mxu0 0.0
        %1236 = vmatprep.subr.mxu0 0.0
        %1237 = vmatpush1.msra.mxu0 0.0
        %1238 = vmatprep.subr.mxu0 0.0
        %1239 = vmatpush1.msra.mxu0 0.0
        %1240 = vmatprep.subr.mxu0 0.0
        %1241 = vmatpush1.msra.mxu0 0.0
        %1242 = vmatprep.subr.mxu0 0.0
        %1243 = vmatpush1.msra.mxu0 0.0
        %1244 = vmatprep.subr.mxu0 0.0
        %1245 = vmatpush1.msra.mxu0 0.0
        %1246 = vmatprep.subr.mxu0 0.0
        %1247 = vmatpush1.msra.mxu0 0.0
        %1248 = vmatprep.subr.mxu0 0.0
        %1249 = vmatpush1.msra.mxu0 0.0
        %1250 = vmatprep.subr.mxu0 0.0
        %1251 = vmatpush1.msra.mxu0 0.0
        %1252 = vmatprep.subr.mxu0 0.0
        %1253 = vmatpush1.msra.mxu0 0.0
        %1254 = vmatprep.subr.mxu0 0.0
        %1255 = vmatpush1.msra.mxu0 0.0
        %1256 = vmatprep.subr.mxu0 0.0
        %1257 = vmatpush1.msra.mxu0 0.0
        %1258 = vmatprep.mubr.f32.mxu0 0.0
        %1259 = vmatmul.mubr.f32.gmra.mrb[0].mxu0 %v1176
        %v1260 = vpop.f32.mrb[0].mxu0
        %v1261 = vadd.f32 0.0, %v1260
        %v1262 = vpop.f32.mrb[0].mxu0
        %1263 = vdwg.mxu0
        %1264 = vmatprep.subr.mxu0 0.0
        %1265 = vmatpush1.msra.mxu0 %v1160
        %1266 = vmatprep.subr.mxu0 0.0
        %1267 = vmatpush1.msra.mxu0 %v1161
        %1268 = vmatprep.subr.mxu0 0.0
        %1269 = vmatpush1.msra.mxu0 %v1162
        %1270 = vmatprep.subr.mxu0 0.0
        %1271 = vmatpush1.msra.mxu0 %v1163
        %1272 = vmatprep.subr.mxu0 0.0
        %1273 = vmatpush1.msra.mxu0 %v1164
        %1274 = vmatprep.subr.mxu0 0.0
        %1275 = vmatpush1.msra.mxu0 %v1165
        %1276 = vmatprep.subr.mxu0 0.0
        %1277 = vmatpush1.msra.mxu0 %v1166
        %1278 = vmatprep.subr.mxu0 0.0
        %1279 = vmatpush1.msra.mxu0 %v1167
        %1280 = vmatprep.subr.mxu0 0.0
        %1281 = vmatpush1.msra.mxu0 %v1168
        %1282 = vmatprep.subr.mxu0 0.0
        %1283 = vmatpush1.msra.mxu0 %v1169
        %1284 = vmatprep.subr.mxu0 0.0
        %1285 = vmatpush1.msra.mxu0 %v1170
        %1286 = vmatprep.subr.mxu0 0.0
        %1287 = vmatpush1.msra.mxu0 %v1171
        %1288 = vmatprep.subr.mxu0 0.0
        %1289 = vmatpush1.msra.mxu0 %v1172
        %1290 = vmatprep.subr.mxu0 0.0
        %1291 = vmatpush1.msra.mxu0 %v1173
        %1292 = vmatprep.subr.mxu0 0.0
        %1293 = vmatpush1.msra.mxu0 %v1174
        %1294 = vmatprep.subr.mxu0 0.0
        %1295 = vmatpush1.msra.mxu0 %v1175
        %1296 = vmatprep.subr.mxu0 0.0
        %1297 = vmatpush1.msra.mxu0 0.0
        %1298 = vmatprep.subr.mxu0 0.0
        %1299 = vmatpush1.msra.mxu0 0.0
        %1300 = vmatprep.subr.mxu0 0.0
        %1301 = vmatpush1.msra.mxu0 0.0
        %1302 = vmatprep.subr.mxu0 0.0
        %1303 = vmatpush1.msra.mxu0 0.0
        %1304 = vmatprep.subr.mxu0 0.0
        %1305 = vmatpush1.msra.mxu0 0.0
        %1306 = vmatprep.subr.mxu0 0.0
        %1307 = vmatpush1.msra.mxu0 0.0
        %1308 = vmatprep.subr.mxu0 0.0
        %1309 = vmatpush1.msra.mxu0 0.0
        %1310 = vmatprep.subr.mxu0 0.0
        %1311 = vmatpush1.msra.mxu0 0.0
        %1312 = vmatprep.subr.mxu0 0.0
        %1313 = vmatpush1.msra.mxu0 0.0
        %1314 = vmatprep.subr.mxu0 0.0
        %1315 = vmatpush1.msra.mxu0 0.0
        %1316 = vmatprep.subr.mxu0 0.0
        %1317 = vmatpush1.msra.mxu0 0.0
        %1318 = vmatprep.subr.mxu0 0.0
        %1319 = vmatpush1.msra.mxu0 0.0
        %1320 = vmatprep.subr.mxu0 0.0
        %1321 = vmatpush1.msra.mxu0 0.0
        %1322 = vmatprep.subr.mxu0 0.0
        %1323 = vmatpush1.msra.mxu0 0.0
        %1324 = vmatprep.subr.mxu0 0.0
        %1325 = vmatpush1.msra.mxu0 0.0
        %1326 = vmatprep.subr.mxu0 0.0
        %1327 = vmatpush1.msra.mxu0 0.0
        %1328 = vmatprep.mubr.f32.mxu0 0.0
        %1329 = vmatmul.mubr.f32.gmra.mrb[0].mxu0 %v1159
        %v1330 = vpop.f32.mrb[0].mxu0
        %v1331 = vadd.f32 %v1261, %v1330
        %v1332 = vpop.f32.mrb[0].mxu0
        %1333 = vdwg.mxu0
        %v1334 = vld [vmem:[#allocation3 + $0x2] sm:$0xff]
        %s1335 = scalar_lea.vmem [#allocation14], 256
        %v1336 = vld [vmem:[%s1335] sm:$0xff]
        %v1337 = vld [vmem:[%s1335 + $0x8] sm:$0xff]
        %v1338 = vld [vmem:[%s1335 + $0x10] sm:$0xff]
        %v1339 = vld [vmem:[%s1335 + $0x18] sm:$0xff]
        %v1340 = vld [vmem:[%s1335 + $0x20] sm:$0xff]
        %v1341 = vld [vmem:[%s1335 + $0x28] sm:$0xff]
        %v1342 = vld [vmem:[%s1335 + $0x30] sm:$0xff]
        %v1343 = vld [vmem:[%s1335 + $0x38] sm:$0xff]
        %v1344 = vld [vmem:[%s1335 + $0x40] sm:$0xff]
        %v1345 = vld [vmem:[%s1335 + $0x48] sm:$0xff]
        %v1346 = vld [vmem:[%s1335 + $0x50] sm:$0xff]
        %v1347 = vld [vmem:[%s1335 + $0x58] sm:$0xff]
        %v1348 = vld [vmem:[%s1335 + $0x60] sm:$0xff]
        %v1349 = vld [vmem:[%s1335 + $0x68] sm:$0xff]
        %v1350 = vld [vmem:[%s1335 + $0x70] sm:$0xff]
        %v1351 = vld [vmem:[%s1335 + $0x78] sm:$0xff]
        %1352 = vmatprep.subr.mxu0 0.0
        %1353 = vmatpush1.msra.mxu0 %v1336
        %1354 = vmatprep.subr.mxu0 0.0
        %1355 = vmatpush1.msra.mxu0 %v1337
        %1356 = vmatprep.subr.mxu0 0.0
        %1357 = vmatpush1.msra.mxu0 %v1338
        %1358 = vmatprep.subr.mxu0 0.0
        %1359 = vmatpush1.msra.mxu0 %v1339
        %1360 = vmatprep.subr.mxu0 0.0
        %1361 = vmatpush1.msra.mxu0 %v1340
        %1362 = vmatprep.subr.mxu0 0.0
        %1363 = vmatpush1.msra.mxu0 %v1341
        %1364 = vmatprep.subr.mxu0 0.0
        %1365 = vmatpush1.msra.mxu0 %v1342
        %1366 = vmatprep.subr.mxu0 0.0
        %1367 = vmatpush1.msra.mxu0 %v1343
        %1368 = vmatprep.subr.mxu0 0.0
        %1369 = vmatpush1.msra.mxu0 %v1344
        %1370 = vmatprep.subr.mxu0 0.0
        %1371 = vmatpush1.msra.mxu0 %v1345
        %1372 = vmatprep.subr.mxu0 0.0
        %1373 = vmatpush1.msra.mxu0 %v1346
        %1374 = vmatprep.subr.mxu0 0.0
        %1375 = vmatpush1.msra.mxu0 %v1347
        %1376 = vmatprep.subr.mxu0 0.0
        %1377 = vmatpush1.msra.mxu0 %v1348
        %1378 = vmatprep.subr.mxu0 0.0
        %1379 = vmatpush1.msra.mxu0 %v1349
        %1380 = vmatprep.subr.mxu0 0.0
        %1381 = vmatpush1.msra.mxu0 %v1350
        %1382 = vmatprep.subr.mxu0 0.0
        %1383 = vmatpush1.msra.mxu0 %v1351
        %1384 = vmatprep.subr.mxu0 0.0
        %1385 = vmatpush1.msra.mxu0 0.0
        %1386 = vmatprep.subr.mxu0 0.0
        %1387 = vmatpush1.msra.mxu0 0.0
        %1388 = vmatprep.subr.mxu0 0.0
        %1389 = vmatpush1.msra.mxu0 0.0
        %1390 = vmatprep.subr.mxu0 0.0
        %1391 = vmatpush1.msra.mxu0 0.0
        %1392 = vmatprep.subr.mxu0 0.0
        %1393 = vmatpush1.msra.mxu0 0.0
        %1394 = vmatprep.subr.mxu0 0.0
        %1395 = vmatpush1.msra.mxu0 0.0
        %1396 = vmatprep.subr.mxu0 0.0
        %1397 = vmatpush1.msra.mxu0 0.0
        %1398 = vmatprep.subr.mxu0 0.0
        %1399 = vmatpush1.msra.mxu0 0.0
        %1400 = vmatprep.subr.mxu0 0.0
        %1401 = vmatpush1.msra.mxu0 0.0
        %1402 = vmatprep.subr.mxu0 0.0
        %1403 = vmatpush1.msra.mxu0 0.0
        %1404 = vmatprep.subr.mxu0 0.0
        %1405 = vmatpush1.msra.mxu0 0.0
        %1406 = vmatprep.subr.mxu0 0.0
        %1407 = vmatpush1.msra.mxu0 0.0
        %1408 = vmatprep.subr.mxu0 0.0
        %1409 = vmatpush1.msra.mxu0 0.0
        %1410 = vmatprep.subr.mxu0 0.0
        %1411 = vmatpush1.msra.mxu0 0.0
        %1412 = vmatprep.subr.mxu0 0.0
        %1413 = vmatpush1.msra.mxu0 0.0
        %1414 = vmatprep.subr.mxu0 0.0
        %1415 = vmatpush1.msra.mxu0 0.0
        %1416 = vmatprep.mubr.f32.mxu0 0.0
        %1417 = vmatmul.mubr.f32.gmra.mrb[0].mxu0 %v1334
        %v1418 = vpop.f32.mrb[0].mxu0
        %v1419 = vadd.f32 0.0, %v1418
        %v1420 = vpop.f32.mrb[0].mxu0
        %1421 = vdwg.mxu0
        %v1422 = vadd.f32 %v1331, %v1419
        %v1423 = vld [vmem:[%s7] sm:$0x1]
        %v1425 = vlaneseq
        %v1426 = vshrl.u32 %v1425, 7
        %v1427 = vsub.s32 0, %v1426
        %v1428 = vrot.slane %v1423, %v1427
        %v1430 = vadd.f32 %v1422, %v1428
        %v1431 = vadd.f32 %v1430, %v839
        %1432 = vst [vmem:[%s545] sm:$0xff] %v1431
        %s1433 = sand.u32 %s298, 1
        %s1434 = scalar_lea.sflag [#allocation6], %s1433
        %s1435 = sand.u32 %s298, 1
        %s1436 = smul.addr %s1435, 8
        %s1437 = scalar_lea.vmem [#allocation17], %s1436
        // Predicated region
        $region113: #{tpu_custom_call.1} parent=59 // pred_check
          %p1438 = pneg %p308
        $region114: #{tpu_custom_call.1} parent=59 // pred_check_branch
          %1440 = sbr.rel (%p1438) target = $region116
        $region115: #{tpu_custom_call.1} parent=59 // pred_region
          %s1442 = ssub.s32 128, 128
          %1443 = vsyncadd %s1434, %s1442
          %s1444 = smul.addr %s37, 2
          %s1445 = sadd.s32 %s38, %s1444
          %s1446 = smul.addr %s1445, 128
          %s1447 = scalar_lea.hbm %s10, %s1446
          %s1449 = sshll.u32 %s1437, 4
          %s1450 = int_to_ptr.vmem [resolvable:$true] %s1449
          %1452 = dma.vmem_to_hbm [thread:$0]  %s1450, 128, %s1447, %s1434
        $region116: #{tpu_custom_call.1} parent=59 // pred_fallthru
          _
      $region60: #{tpu_custom_call.1} parent=5 // pred_fallthru
        _
      %p1453 = scmp.le.s32.totalorder 2, %s28
      // Predicated region
      $region117: #{tpu_custom_call.1} parent=5 // pred_check
        %p1454 = pneg %p1453
      $region118: #{tpu_custom_call.1} parent=5 // pred_check_branch
        %1456 = sbr.rel (%p1454) target = $region120
      $region119: #{tpu_custom_call.1} parent=5 // pred_region
        %s1457 = ssub.s32 %s28, 2
        // Predicated region
        $region121: #{tpu_custom_call.1} parent=119 // pred_check
          %p1458 = pneg %p314
        $region122: #{tpu_custom_call.1} parent=119 // pred_check_branch
          %1460 = sbr.rel (%p1458) target = $region124
        $region123: #{tpu_custom_call.1} parent=119 // pred_region
          %s1461 = sand.u32 %s299, 1
          %s1462 = scalar_lea.sflag [#allocation6], %s1461
          %s1463 = sand.u32 %s299, 1
          %s1464 = smul.addr %s1463, 8
          %s1465 = scalar_lea.vmem [#allocation17], %s1464
          %1466 = dma.done %s1462, 128
        $region124: #{tpu_custom_call.1} parent=119 // pred_fallthru
          _
      $region120: #{tpu_custom_call.1} parent=5 // pred_fallthru
        _
    $region6: #{tpu_custom_call.1} parent=1 // loop_footer
      %s32 = sadd.s32 1, %s28
    $region7: #{tpu_custom_call.1} parent=1 // loop_footer_branch
      %27 = sbr.rel target = $region3
    $region8: #{tpu_custom_call.1} parent=1 // loop_exit
      _
    %1467 = vsyncpa [#allocation5], 1
    %s1468 = scalar_lea.sflag [#allocation5], 1
    %1469 = vsyncpa %s1468, 1
    %1470 = vsyncpa [#allocation10], 1
    %s1471 = scalar_lea.sflag [#allocation10], 1
    %1472 = vsyncpa %s1471, 1
    %1473 = vsyncpa [#allocation13], 1
    %1474 = vsyncpa [#allocation16], 1
    %1475 = vsyncpa [#allocation6], 1
    %s1476 = scalar_lea.sflag [#allocation6], 1
    %1477 = vsyncpa %s1476, 1
    %1478 = vsyncpa [#allocation7], 1
    %s1479 = scalar_lea.sflag [#allocation7], 1
    %1480 = vsyncpa %s1479, 1

</llo_original>
